<compile_context>
chip_gen: v5e
topology: v5e:2x2
jax: 0.10.0
libtpu: 0.0.40
codegen_flags: <defaults>
</compile_context>

<pallas_src>
import functools
import math

import jax
import jax.numpy as jnp
from jax.experimental import pallas as pl
from jax.experimental.pallas import tpu as pltpu

_LANE = 128
_SUBLANE = 8


def _round_up(n, m):
    return ((n + m - 1) // m) * m


# ----------------------------------------------------------------------------
# Fused Pallas kernel
# ----------------------------------------------------------------------------
def _spline_slab(x, cfg):
    """ReLU-KAN basis slab: s_j = (relu(x-plo_j)*relu(phi_j-x))^2 * r^2.

    x: (TB, F_pad).  Phase constants are Python floats baked into the unrolled
    loop; slabs are stacked j-major along lanes -> (TB, gk*F_pad), 128-aligned.
    """
    r2 = cfg["r"] * cfg["r"]
    slabs = []
    for plo_j, phi_j in zip(cfg["plo"], cfg["phi"]):
        x1 = jnp.maximum(x - plo_j, 0.0)
        x2 = jnp.maximum(phi_j - x, 0.0)
        p = x1 * x2
        slabs.append((p * p) * r2)
    return jnp.concatenate(slabs, axis=-1)


def _make_fused_kernel(res_cfgs, final_cfg, pad_fin):
    n_res = len(res_cfgs)

    def kernel(*refs):
        x_ref = refs[0]
        out_ref = refs[-1]
        params = refs[1:-1]

        x = x_ref[...]                                    # (TB, F_pad0) f32
        result = jnp.zeros(out_ref.shape, jnp.float32)    # (TB, pad_fin)

        # residual ReLU-KAN layers (fc + fc_final fused in one weight)
        for i, cfg in enumerate(res_cfgs):
            w = params[2 * i][...]                        # (gk*F_pad, pad_out+pad_fin)
            b = params[2 * i + 1][...]                    # (1, pad_out+pad_fin)
            s = _spline_slab(x, cfg)                      # (TB, gk*F_pad)
            y_all = jnp.dot(s, w, preferred_element_type=jnp.float32) + b
            po = cfg["pad_out"]
            result = result + y_all[:, po:po + pad_fin]   # fc_final head (aligned)
            x = y_all[:, :po]                             # fc head -> next input

        # final plain Layer (single head)
        w = params[2 * n_res][...]                        # (gk*F_pad, pad_fin)
        b = params[2 * n_res + 1][...]                    # (1, pad_fin)
        s = _spline_slab(x, final_cfg)
        result = result + jnp.dot(s, w, preferred_element_type=jnp.float32) + b

        out_ref[...] = result                             # lane-dense store

    return kernel


# ----------------------------------------------------------------------------
# Parameter construction (deterministic, mirrors the PyTorch __init__)
# ----------------------------------------------------------------------------
def _phase_scalars(g, k, center_zero):
    gk = g + k
    # TODO(synk): center_zero recentering assumed (LayerBase source unavailable).
    shift = 0.5 if center_zero else 0.0
    plo = tuple((j - k) / g - shift for j in range(gk))
    phi = tuple(p + (k + 1) / g for p in plo)
    return plo, phi


def _kaiming_fan_in(key, out_dim, in_dim):
    # kaiming_normal_(mode='fan_in', nonlinearity='relu'): std = sqrt(2 / fan_in)
    std = math.sqrt(2.0 / in_dim)
    return jax.random.normal(key, (out_dim, in_dim), jnp.float32) * std


def _permute_pad_weight(W, F, gk, F_pad):
    """(out, F*gk) torch layout (in idx = f*gk + j) -> (gk*F_pad, out).

    Rows are j-major (row = j*F_pad + f); rows for padded features f >= F are
    zero, so lane-padded activations contribute nothing.
    """
    out_dim = W.shape[0]
    Wp = jnp.transpose(W.T.reshape(F, gk, out_dim), (1, 0, 2))    # (gk, F, out)
    buf = jnp.zeros((gk, F_pad, out_dim), jnp.float32).at[:, :F, :].set(Wp)
    return buf.reshape(gk * F_pad, out_dim)


def build_res_relu_kan(key, layers_len, layers_channels, g, k, center_zero=False):
    gk = g + k
    r = 4.0 * g * g / ((k + 1) ** 2)
    plo, phi = _phase_scalars(g, k, center_zero)

    fin_len, fin_ch = layers_len[-1], layers_channels[-1]
    fin_dim = fin_ch * fin_len
    pad_fin = _round_up(fin_dim, _LANE)

    pairs = list(zip(layers_len[:-2], layers_channels[:-2],
                     layers_len[1:], layers_channels[1:]))
    keys = jax.random.split(key, 2 * len(pairs) + 1)

    res_cfgs, weights, raw = [], [], []
    for idx, (il, ic, ol, oc) in enumerate(pairs):
        F = ic * il
        F_pad = _round_up(F, _LANE)
        out_dim = oc * ol
        pad_out = _round_up(out_dim, _LANE)

        W_fc = _kaiming_fan_in(keys[2 * idx], out_dim, F * gk)
        W_fin = _kaiming_fan_in(keys[2 * idx + 1], fin_dim, F * gk)
        b_fc = jnp.zeros((out_dim,), jnp.float32)
        b_fin = jnp.zeros((fin_dim,), jnp.float32)

        # Combined [fc | fc_final] weight, both heads lane-padded to 128.
        W_comb = jnp.zeros((gk * F_pad, pad_out + pad_fin), jnp.float32)
        W_comb = W_comb.at[:, :out_dim].set(_permute_pad_weight(W_fc, F, gk, F_pad))
        W_comb = W_comb.at[:, pad_out:pad_out + fin_dim].set(
            _permute_pad_weight(W_fin, F, gk, F_pad))
        b_comb = jnp.zeros((1, pad_out + pad_fin), jnp.float32)
        b_comb = b_comb.at[0, :out_dim].set(b_fc)
        b_comb = b_comb.at[0, pad_out:pad_out + fin_dim].set(b_fin)

        res_cfgs.append(dict(gk=gk, F=F, F_pad=F_pad, r=r, plo=plo, phi=phi,
                             out_dim=out_dim, pad_out=pad_out,
                             out_channels=oc, out_len=ol))
        weights.append((W_comb, b_comb))
        raw.append(dict(W_fc=W_fc, b_fc=b_fc, W_fin=W_fin, b_fin=b_fin,
                        out_channels=oc, out_len=ol))

    # Final plain Layer.
    Fl = layers_channels[-2] * layers_len[-2]
    Fl_pad = _round_up(Fl, _LANE)
    W_f = _kaiming_fan_in(keys[-1], fin_dim, Fl * gk)
    b_f = jnp.zeros((fin_dim,), jnp.float32)
    W_f_pack = jnp.zeros((gk * Fl_pad, pad_fin), jnp.float32)
    W_f_pack = W_f_pack.at[:, :fin_dim].set(_permute_pad_weight(W_f, Fl, gk, Fl_pad))
    b_f_pack = jnp.zeros((1, pad_fin), jnp.float32).at[0, :fin_dim].set(b_f)
    final_cfg = dict(gk=gk, F=Fl, F_pad=Fl_pad, r=r, plo=plo, phi=phi)
    weights.append((W_f_pack, b_f_pack))
    raw.append(dict(W_fc=W_f, b_fc=b_f))

    return dict(res_cfgs=res_cfgs, final_cfg=final_cfg, weights=weights, raw=raw,
                g=g, k=k, r=r, center_zero=center_zero,
                final_channels=fin_ch, final_len=fin_len,
                fin_dim=fin_dim, pad_fin=pad_fin)


# ----------------------------------------------------------------------------
# Forward pass (single fused pallas_call, batch-tiled "parallel" grid)
# ----------------------------------------------------------------------------
def res_relu_kan_forward(x, params):
    B = x.shape[0]
    cfgs = params["res_cfgs"]
    final_cfg = params["final_cfg"]
    pad_fin = params["pad_fin"]

    xf = x.reshape(B, -1).astype(jnp.float32)
    F_pad0 = cfgs[0]["F_pad"] if cfgs else final_cfg["F_pad"]

    # Batch tiling: sublane-aligned tile, grid is megacore-parallel.
    TB = min(_round_up(B, _SUBLANE), 128)
    grid_b = pl.cdiv(B, TB)
    B_pad = grid_b * TB
    xp = jnp.pad(xf, ((0, B_pad - B), (0, F_pad0 - xf.shape[1])))

    ins = [xp]
    in_specs = [pl.BlockSpec((TB, F_pad0), lambda b: (b, 0))]
    for w, b in params["weights"]:
        ins.extend((w, b))
        # Constant block index across the batch grid -> no re-DMA per tile.
        in_specs.append(pl.BlockSpec(w.shape, lambda bb: (0, 0)))
        in_specs.append(pl.BlockSpec(b.shape, lambda bb: (0, 0)))

    kernel = _make_fused_kernel(cfgs, final_cfg, pad_fin)
    out = pl.pallas_call(
        kernel,
        out_shape=jax.ShapeDtypeStruct((B_pad, pad_fin), jnp.float32),
        grid=(grid_b,),
        in_specs=in_specs,
        out_specs=pl.BlockSpec((TB, pad_fin), lambda b: (b, 0)),
        compiler_params=pltpu.CompilerParams(
            dimension_semantics=("parallel",)),
    )(*ins)

    fin_ch, fin_len = params["final_channels"], params["final_len"]
    return out[:B, :params["fin_dim"]].reshape(B, fin_ch, fin_len)


# ----------------------------------------------------------------------------
# Pure-JAX reference (mirrors the PyTorch forward) for correctness checking
# ----------------------------------------------------------------------------
def _splines_ref(x, g, k, r, center_zero):
    B = x.shape[0]
    plo = jnp.arange(-k, g, dtype=jnp.float32) / g
    if center_zero:
        plo = plo - 0.5
    phi = plo + (k + 1) / g
    xf = x.reshape(B, -1)[:, :, None]                      # (B, F, 1)
    s = jnp.maximum(xf - plo, 0.0) * jnp.maximum(phi - xf, 0.0) * r
    s = s * s
    return s.reshape(B, -1)                                # torch flatten(1,3): f*gk + j


def res_relu_kan_ref(x, params):
    g, k, r, cz = params["g"], params["k"], params["r"], params["center_zero"]
    raw = params["raw"]
    result = None
    for i, cfg in enumerate(params["res_cfgs"]):
        B = x.shape[0]
        s = _splines_ref(x, g, k, r, cz)
        p = raw[i]
        y = s @ p["W_fc"].T + p["b_fc"]
        yfin = s @ p["W_fin"].T + p["b_fin"]
        x = y.reshape(B, cfg["out_channels"], cfg["out_len"])
        xfin = yfin.reshape(B, params["final_channels"], params["final_len"])
        result = xfin if result is None else result + xfin
    B = x.shape[0]
    s = _splines_ref(x, g, k, r, cz)
    p = raw[-1]
    y = s @ p["W_fc"].T + p["b_fc"]
    xfin = y.reshape(B, params["final_channels"], params["final_len"])
    result = xfin if result is None else result + xfin
    return result


# ----------------------------------------------------------------------------
if __name__ == "__main__":
    layers_len = [16, 12, 12, 8]
    layers_channels = [4, 3, 3, 2]
    g, k = 5, 3
    B = 2

    key = jax.random.PRNGKey(0)
    k_params, k_x = jax.random.split(key)
    params = build_res_relu_kan(k_params, layers_len, layers_channels, g, k,
                                center_zero=False)

    x = jax.random.normal(k_x, (B, layers_channels[0], layers_len[0]), jnp.float32)

    out = jax.block_until_ready(res_relu_kan_forward(x, params))
    ref = res_relu_kan_ref(x, params)

    assert out.shape == (B, layers_channels[-1], layers_len[-1]), out.shape
    err = float(jnp.max(jnp.abs(out - ref)))
    assert jnp.allclose(out, ref, atol=1e-2, rtol=1e-2), err

    print("KERNEL_OK")
</pallas_src>

<mosaic_0001>
module attributes {stable_mosaic.version = 11 : i64} {
  func.func @kernel(%arg0: i32, %arg1: memref<8x128xf32, #tpu.memory_space<vmem>>, %arg2: memref<1024x256xf32, #tpu.memory_space<vmem>>, %arg3: memref<1x256xf32, #tpu.memory_space<vmem>>, %arg4: memref<1024x256xf32, #tpu.memory_space<vmem>>, %arg5: memref<1x256xf32, #tpu.memory_space<vmem>>, %arg6: memref<1024x128xf32, #tpu.memory_space<vmem>>, %arg7: memref<1x128xf32, #tpu.memory_space<vmem>>, %arg8: memref<8x128xf32, #tpu.memory_space<vmem>>) attributes {dimension_semantics = [#tpu.dimension_semantics<parallel>], iteration_bounds = array<i64: 1>, scalar_prefetch = 0 : i64, scratch_operands = 0 : i64, tpu.core_type = #tpu.core_type<tc>, window_params = [{transform_indices = @transform_0, window_bounds = array<i64: 8, 128>}, {pipeline_mode = #tpu.pipeline_mode<synchronous>, transform_indices = @transform_1, window_bounds = array<i64: 1024, 256>}, {pipeline_mode = #tpu.pipeline_mode<synchronous>, transform_indices = @transform_2, window_bounds = array<i64: 1, 256>}, {pipeline_mode = #tpu.pipeline_mode<synchronous>, transform_indices = @transform_3, window_bounds = array<i64: 1024, 256>}, {pipeline_mode = #tpu.pipeline_mode<synchronous>, transform_indices = @transform_4, window_bounds = array<i64: 1, 256>}, {pipeline_mode = #tpu.pipeline_mode<synchronous>, transform_indices = @transform_5, window_bounds = array<i64: 1024, 128>}, {pipeline_mode = #tpu.pipeline_mode<synchronous>, transform_indices = @transform_6, window_bounds = array<i64: 1, 128>}, {transform_indices = @transform_7, window_bounds = array<i64: 8, 128>}]} {
    %c0 = arith.constant 0 : index
    %c0_0 = arith.constant 0 : index
    %0 = vector.load %arg1[%c0, %c0_0] : memref<8x128xf32, #tpu.memory_space<vmem>>, vector<8x128xf32>
    %cst = arith.constant 0.000000e+00 : f32
    %1 = vector.broadcast %cst : f32 to vector<8x128xf32>
    %c0_1 = arith.constant 0 : index
    %c0_2 = arith.constant 0 : index
    %2 = vector.load %arg2[%c0_1, %c0_2] : memref<1024x256xf32, #tpu.memory_space<vmem>>, vector<1024x256xf32>
    %c0_3 = arith.constant 0 : index
    %c0_4 = arith.constant 0 : index
    %3 = vector.load %arg3[%c0_3, %c0_4] : memref<1x256xf32, #tpu.memory_space<vmem>>, vector<1x256xf32>
    %cst_5 = arith.constant -6.000000e-01 : f32
    %4 = vector.broadcast %cst_5 : f32 to vector<8x128xf32>
    %5 = arith.subf %0, %4 : vector<8x128xf32>
    %cst_6 = arith.constant 0.000000e+00 : f32
    %6 = vector.broadcast %cst_6 : f32 to vector<8x128xf32>
    %7 = arith.maximumf %5, %6 : vector<8x128xf32>
    %cst_7 = arith.constant 2.000000e-01 : f32
    %8 = vector.broadcast %cst_7 : f32 to vector<8x128xf32>
    %9 = arith.subf %8, %0 : vector<8x128xf32>
    %cst_8 = arith.constant 0.000000e+00 : f32
    %10 = vector.broadcast %cst_8 : f32 to vector<8x128xf32>
    %11 = arith.maximumf %9, %10 : vector<8x128xf32>
    %12 = arith.mulf %7, %11 : vector<8x128xf32>
    %13 = arith.mulf %12, %12 : vector<8x128xf32>
    %cst_9 = arith.constant 3.906250e+01 : f32
    %14 = vector.broadcast %cst_9 : f32 to vector<8x128xf32>
    %15 = arith.mulf %13, %14 : vector<8x128xf32>
    %cst_10 = arith.constant -4.000000e-01 : f32
    %16 = vector.broadcast %cst_10 : f32 to vector<8x128xf32>
    %17 = arith.subf %0, %16 : vector<8x128xf32>
    %cst_11 = arith.constant 0.000000e+00 : f32
    %18 = vector.broadcast %cst_11 : f32 to vector<8x128xf32>
    %19 = arith.maximumf %17, %18 : vector<8x128xf32>
    %cst_12 = arith.constant 4.000000e-01 : f32
    %20 = vector.broadcast %cst_12 : f32 to vector<8x128xf32>
    %21 = arith.subf %20, %0 : vector<8x128xf32>
    %cst_13 = arith.constant 0.000000e+00 : f32
    %22 = vector.broadcast %cst_13 : f32 to vector<8x128xf32>
    %23 = arith.maximumf %21, %22 : vector<8x128xf32>
    %24 = arith.mulf %19, %23 : vector<8x128xf32>
    %25 = arith.mulf %24, %24 : vector<8x128xf32>
    %cst_14 = arith.constant 3.906250e+01 : f32
    %26 = vector.broadcast %cst_14 : f32 to vector<8x128xf32>
    %27 = arith.mulf %25, %26 : vector<8x128xf32>
    %cst_15 = arith.constant -2.000000e-01 : f32
    %28 = vector.broadcast %cst_15 : f32 to vector<8x128xf32>
    %29 = arith.subf %0, %28 : vector<8x128xf32>
    %cst_16 = arith.constant 0.000000e+00 : f32
    %30 = vector.broadcast %cst_16 : f32 to vector<8x128xf32>
    %31 = arith.maximumf %29, %30 : vector<8x128xf32>
    %cst_17 = arith.constant 6.000000e-01 : f32
    %32 = vector.broadcast %cst_17 : f32 to vector<8x128xf32>
    %33 = arith.subf %32, %0 : vector<8x128xf32>
    %cst_18 = arith.constant 0.000000e+00 : f32
    %34 = vector.broadcast %cst_18 : f32 to vector<8x128xf32>
    %35 = arith.maximumf %33, %34 : vector<8x128xf32>
    %36 = arith.mulf %31, %35 : vector<8x128xf32>
    %37 = arith.mulf %36, %36 : vector<8x128xf32>
    %cst_19 = arith.constant 3.906250e+01 : f32
    %38 = vector.broadcast %cst_19 : f32 to vector<8x128xf32>
    %39 = arith.mulf %37, %38 : vector<8x128xf32>
    %cst_20 = arith.constant 0.000000e+00 : f32
    %40 = vector.broadcast %cst_20 : f32 to vector<8x128xf32>
    %41 = arith.subf %0, %40 : vector<8x128xf32>
    %cst_21 = arith.constant 0.000000e+00 : f32
    %42 = vector.broadcast %cst_21 : f32 to vector<8x128xf32>
    %43 = arith.maximumf %41, %42 : vector<8x128xf32>
    %cst_22 = arith.constant 8.000000e-01 : f32
    %44 = vector.broadcast %cst_22 : f32 to vector<8x128xf32>
    %45 = arith.subf %44, %0 : vector<8x128xf32>
    %cst_23 = arith.constant 0.000000e+00 : f32
    %46 = vector.broadcast %cst_23 : f32 to vector<8x128xf32>
    %47 = arith.maximumf %45, %46 : vector<8x128xf32>
    %48 = arith.mulf %43, %47 : vector<8x128xf32>
    %49 = arith.mulf %48, %48 : vector<8x128xf32>
    %cst_24 = arith.constant 3.906250e+01 : f32
    %50 = vector.broadcast %cst_24 : f32 to vector<8x128xf32>
    %51 = arith.mulf %49, %50 : vector<8x128xf32>
    %cst_25 = arith.constant 2.000000e-01 : f32
    %52 = vector.broadcast %cst_25 : f32 to vector<8x128xf32>
    %53 = arith.subf %0, %52 : vector<8x128xf32>
    %cst_26 = arith.constant 0.000000e+00 : f32
    %54 = vector.broadcast %cst_26 : f32 to vector<8x128xf32>
    %55 = arith.maximumf %53, %54 : vector<8x128xf32>
    %cst_27 = arith.constant 1.000000e+00 : f32
    %56 = vector.broadcast %cst_27 : f32 to vector<8x128xf32>
    %57 = arith.subf %56, %0 : vector<8x128xf32>
    %cst_28 = arith.constant 0.000000e+00 : f32
    %58 = vector.broadcast %cst_28 : f32 to vector<8x128xf32>
    %59 = arith.maximumf %57, %58 : vector<8x128xf32>
    %60 = arith.mulf %55, %59 : vector<8x128xf32>
    %61 = arith.mulf %60, %60 : vector<8x128xf32>
    %cst_29 = arith.constant 3.906250e+01 : f32
    %62 = vector.broadcast %cst_29 : f32 to vector<8x128xf32>
    %63 = arith.mulf %61, %62 : vector<8x128xf32>
    %cst_30 = arith.constant 4.000000e-01 : f32
    %64 = vector.broadcast %cst_30 : f32 to vector<8x128xf32>
    %65 = arith.subf %0, %64 : vector<8x128xf32>
    %cst_31 = arith.constant 0.000000e+00 : f32
    %66 = vector.broadcast %cst_31 : f32 to vector<8x128xf32>
    %67 = arith.maximumf %65, %66 : vector<8x128xf32>
    %cst_32 = arith.constant 1.200000e+00 : f32
    %68 = vector.broadcast %cst_32 : f32 to vector<8x128xf32>
    %69 = arith.subf %68, %0 : vector<8x128xf32>
    %cst_33 = arith.constant 0.000000e+00 : f32
    %70 = vector.broadcast %cst_33 : f32 to vector<8x128xf32>
    %71 = arith.maximumf %69, %70 : vector<8x128xf32>
    %72 = arith.mulf %67, %71 : vector<8x128xf32>
    %73 = arith.mulf %72, %72 : vector<8x128xf32>
    %cst_34 = arith.constant 3.906250e+01 : f32
    %74 = vector.broadcast %cst_34 : f32 to vector<8x128xf32>
    %75 = arith.mulf %73, %74 : vector<8x128xf32>
    %cst_35 = arith.constant 6.000000e-01 : f32
    %76 = vector.broadcast %cst_35 : f32 to vector<8x128xf32>
    %77 = arith.subf %0, %76 : vector<8x128xf32>
    %cst_36 = arith.constant 0.000000e+00 : f32
    %78 = vector.broadcast %cst_36 : f32 to vector<8x128xf32>
    %79 = arith.maximumf %77, %78 : vector<8x128xf32>
    %cst_37 = arith.constant 1.400000e+00 : f32
    %80 = vector.broadcast %cst_37 : f32 to vector<8x128xf32>
    %81 = arith.subf %80, %0 : vector<8x128xf32>
    %cst_38 = arith.constant 0.000000e+00 : f32
    %82 = vector.broadcast %cst_38 : f32 to vector<8x128xf32>
    %83 = arith.maximumf %81, %82 : vector<8x128xf32>
    %84 = arith.mulf %79, %83 : vector<8x128xf32>
    %85 = arith.mulf %84, %84 : vector<8x128xf32>
    %cst_39 = arith.constant 3.906250e+01 : f32
    %86 = vector.broadcast %cst_39 : f32 to vector<8x128xf32>
    %87 = arith.mulf %85, %86 : vector<8x128xf32>
    %cst_40 = arith.constant 8.000000e-01 : f32
    %88 = vector.broadcast %cst_40 : f32 to vector<8x128xf32>
    %89 = arith.subf %0, %88 : vector<8x128xf32>
    %cst_41 = arith.constant 0.000000e+00 : f32
    %90 = vector.broadcast %cst_41 : f32 to vector<8x128xf32>
    %91 = arith.maximumf %89, %90 : vector<8x128xf32>
    %cst_42 = arith.constant 1.600000e+00 : f32
    %92 = vector.broadcast %cst_42 : f32 to vector<8x128xf32>
    %93 = arith.subf %92, %0 : vector<8x128xf32>
    %cst_43 = arith.constant 0.000000e+00 : f32
    %94 = vector.broadcast %cst_43 : f32 to vector<8x128xf32>
    %95 = arith.maximumf %93, %94 : vector<8x128xf32>
    %96 = arith.mulf %91, %95 : vector<8x128xf32>
    %97 = arith.mulf %96, %96 : vector<8x128xf32>
    %cst_44 = arith.constant 3.906250e+01 : f32
    %98 = vector.broadcast %cst_44 : f32 to vector<8x128xf32>
    %99 = arith.mulf %97, %98 : vector<8x128xf32>
    %100 = tpu.concatenate %15, %27, %39, %51, %63, %75, %87, %99 in 1 : vector<8x128xf32>, vector<8x128xf32>, vector<8x128xf32>, vector<8x128xf32>, vector<8x128xf32>, vector<8x128xf32>, vector<8x128xf32>, vector<8x128xf32> -> vector<8x1024xf32>
    %cst_45 = arith.constant dense<0.000000e+00> : vector<8x256xf32>
    %101 = tpu.matmul %100, %2, %cst_45 {dimension_numbers = #tpu.dot_dimension_numbers<[1], [0], [0], [1], [0, 0, 1, 1], [], []>} : vector<8x1024xf32>, vector<1024x256xf32>, vector<8x256xf32> -> vector<8x256xf32>
    %102 = vector.broadcast %3 : vector<1x256xf32> to vector<8x256xf32>
    %103 = arith.addf %101, %102 : vector<8x256xf32>
    %104 = vector.extract_strided_slice %103 {offsets = [0, 128], sizes = [8, 128], strides = [1, 1]} : vector<8x256xf32> to vector<8x128xf32>
    %105 = arith.addf %1, %104 : vector<8x128xf32>
    %106 = vector.extract_strided_slice %103 {offsets = [0, 0], sizes = [8, 128], strides = [1, 1]} : vector<8x256xf32> to vector<8x128xf32>
    %c0_46 = arith.constant 0 : index
    %c0_47 = arith.constant 0 : index
    %107 = vector.load %arg4[%c0_46, %c0_47] : memref<1024x256xf32, #tpu.memory_space<vmem>>, vector<1024x256xf32>
    %c0_48 = arith.constant 0 : index
    %c0_49 = arith.constant 0 : index
    %108 = vector.load %arg5[%c0_48, %c0_49] : memref<1x256xf32, #tpu.memory_space<vmem>>, vector<1x256xf32>
    %cst_50 = arith.constant -6.000000e-01 : f32
    %109 = vector.broadcast %cst_50 : f32 to vector<8x128xf32>
    %110 = arith.subf %106, %109 : vector<8x128xf32>
    %cst_51 = arith.constant 0.000000e+00 : f32
    %111 = vector.broadcast %cst_51 : f32 to vector<8x128xf32>
    %112 = arith.maximumf %110, %111 : vector<8x128xf32>
    %cst_52 = arith.constant 2.000000e-01 : f32
    %113 = vector.broadcast %cst_52 : f32 to vector<8x128xf32>
    %114 = arith.subf %113, %106 : vector<8x128xf32>
    %cst_53 = arith.constant 0.000000e+00 : f32
    %115 = vector.broadcast %cst_53 : f32 to vector<8x128xf32>
    %116 = arith.maximumf %114, %115 : vector<8x128xf32>
    %117 = arith.mulf %112, %116 : vector<8x128xf32>
    %118 = arith.mulf %117, %117 : vector<8x128xf32>
    %cst_54 = arith.constant 3.906250e+01 : f32
    %119 = vector.broadcast %cst_54 : f32 to vector<8x128xf32>
    %120 = arith.mulf %118, %119 : vector<8x128xf32>
    %cst_55 = arith.constant -4.000000e-01 : f32
    %121 = vector.broadcast %cst_55 : f32 to vector<8x128xf32>
    %122 = arith.subf %106, %121 : vector<8x128xf32>
    %cst_56 = arith.constant 0.000000e+00 : f32
    %123 = vector.broadcast %cst_56 : f32 to vector<8x128xf32>
    %124 = arith.maximumf %122, %123 : vector<8x128xf32>
    %cst_57 = arith.constant 4.000000e-01 : f32
    %125 = vector.broadcast %cst_57 : f32 to vector<8x128xf32>
    %126 = arith.subf %125, %106 : vector<8x128xf32>
    %cst_58 = arith.constant 0.000000e+00 : f32
    %127 = vector.broadcast %cst_58 : f32 to vector<8x128xf32>
    %128 = arith.maximumf %126, %127 : vector<8x128xf32>
    %129 = arith.mulf %124, %128 : vector<8x128xf32>
    %130 = arith.mulf %129, %129 : vector<8x128xf32>
    %cst_59 = arith.constant 3.906250e+01 : f32
    %131 = vector.broadcast %cst_59 : f32 to vector<8x128xf32>
    %132 = arith.mulf %130, %131 : vector<8x128xf32>
    %cst_60 = arith.constant -2.000000e-01 : f32
    %133 = vector.broadcast %cst_60 : f32 to vector<8x128xf32>
    %134 = arith.subf %106, %133 : vector<8x128xf32>
    %cst_61 = arith.constant 0.000000e+00 : f32
    %135 = vector.broadcast %cst_61 : f32 to vector<8x128xf32>
    %136 = arith.maximumf %134, %135 : vector<8x128xf32>
    %cst_62 = arith.constant 6.000000e-01 : f32
    %137 = vector.broadcast %cst_62 : f32 to vector<8x128xf32>
    %138 = arith.subf %137, %106 : vector<8x128xf32>
    %cst_63 = arith.constant 0.000000e+00 : f32
    %139 = vector.broadcast %cst_63 : f32 to vector<8x128xf32>
    %140 = arith.maximumf %138, %139 : vector<8x128xf32>
    %141 = arith.mulf %136, %140 : vector<8x128xf32>
    %142 = arith.mulf %141, %141 : vector<8x128xf32>
    %cst_64 = arith.constant 3.906250e+01 : f32
    %143 = vector.broadcast %cst_64 : f32 to vector<8x128xf32>
    %144 = arith.mulf %142, %143 : vector<8x128xf32>
    %cst_65 = arith.constant 0.000000e+00 : f32
    %145 = vector.broadcast %cst_65 : f32 to vector<8x128xf32>
    %146 = arith.subf %106, %145 : vector<8x128xf32>
    %cst_66 = arith.constant 0.000000e+00 : f32
    %147 = vector.broadcast %cst_66 : f32 to vector<8x128xf32>
    %148 = arith.maximumf %146, %147 : vector<8x128xf32>
    %cst_67 = arith.constant 8.000000e-01 : f32
    %149 = vector.broadcast %cst_67 : f32 to vector<8x128xf32>
    %150 = arith.subf %149, %106 : vector<8x128xf32>
    %cst_68 = arith.constant 0.000000e+00 : f32
    %151 = vector.broadcast %cst_68 : f32 to vector<8x128xf32>
    %152 = arith.maximumf %150, %151 : vector<8x128xf32>
    %153 = arith.mulf %148, %152 : vector<8x128xf32>
    %154 = arith.mulf %153, %153 : vector<8x128xf32>
    %cst_69 = arith.constant 3.906250e+01 : f32
    %155 = vector.broadcast %cst_69 : f32 to vector<8x128xf32>
    %156 = arith.mulf %154, %155 : vector<8x128xf32>
    %cst_70 = arith.constant 2.000000e-01 : f32
    %157 = vector.broadcast %cst_70 : f32 to vector<8x128xf32>
    %158 = arith.subf %106, %157 : vector<8x128xf32>
    %cst_71 = arith.constant 0.000000e+00 : f32
    %159 = vector.broadcast %cst_71 : f32 to vector<8x128xf32>
    %160 = arith.maximumf %158, %159 : vector<8x128xf32>
    %cst_72 = arith.constant 1.000000e+00 : f32
    %161 = vector.broadcast %cst_72 : f32 to vector<8x128xf32>
    %162 = arith.subf %161, %106 : vector<8x128xf32>
    %cst_73 = arith.constant 0.000000e+00 : f32
    %163 = vector.broadcast %cst_73 : f32 to vector<8x128xf32>
    %164 = arith.maximumf %162, %163 : vector<8x128xf32>
    %165 = arith.mulf %160, %164 : vector<8x128xf32>
    %166 = arith.mulf %165, %165 : vector<8x128xf32>
    %cst_74 = arith.constant 3.906250e+01 : f32
    %167 = vector.broadcast %cst_74 : f32 to vector<8x128xf32>
    %168 = arith.mulf %166, %167 : vector<8x128xf32>
    %cst_75 = arith.constant 4.000000e-01 : f32
    %169 = vector.broadcast %cst_75 : f32 to vector<8x128xf32>
    %170 = arith.subf %106, %169 : vector<8x128xf32>
    %cst_76 = arith.constant 0.000000e+00 : f32
    %171 = vector.broadcast %cst_76 : f32 to vector<8x128xf32>
    %172 = arith.maximumf %170, %171 : vector<8x128xf32>
    %cst_77 = arith.constant 1.200000e+00 : f32
    %173 = vector.broadcast %cst_77 : f32 to vector<8x128xf32>
    %174 = arith.subf %173, %106 : vector<8x128xf32>
    %cst_78 = arith.constant 0.000000e+00 : f32
    %175 = vector.broadcast %cst_78 : f32 to vector<8x128xf32>
    %176 = arith.maximumf %174, %175 : vector<8x128xf32>
    %177 = arith.mulf %172, %176 : vector<8x128xf32>
    %178 = arith.mulf %177, %177 : vector<8x128xf32>
    %cst_79 = arith.constant 3.906250e+01 : f32
    %179 = vector.broadcast %cst_79 : f32 to vector<8x128xf32>
    %180 = arith.mulf %178, %179 : vector<8x128xf32>
    %cst_80 = arith.constant 6.000000e-01 : f32
    %181 = vector.broadcast %cst_80 : f32 to vector<8x128xf32>
    %182 = arith.subf %106, %181 : vector<8x128xf32>
    %cst_81 = arith.constant 0.000000e+00 : f32
    %183 = vector.broadcast %cst_81 : f32 to vector<8x128xf32>
    %184 = arith.maximumf %182, %183 : vector<8x128xf32>
    %cst_82 = arith.constant 1.400000e+00 : f32
    %185 = vector.broadcast %cst_82 : f32 to vector<8x128xf32>
    %186 = arith.subf %185, %106 : vector<8x128xf32>
    %cst_83 = arith.constant 0.000000e+00 : f32
    %187 = vector.broadcast %cst_83 : f32 to vector<8x128xf32>
    %188 = arith.maximumf %186, %187 : vector<8x128xf32>
    %189 = arith.mulf %184, %188 : vector<8x128xf32>
    %190 = arith.mulf %189, %189 : vector<8x128xf32>
    %cst_84 = arith.constant 3.906250e+01 : f32
    %191 = vector.broadcast %cst_84 : f32 to vector<8x128xf32>
    %192 = arith.mulf %190, %191 : vector<8x128xf32>
    %cst_85 = arith.constant 8.000000e-01 : f32
    %193 = vector.broadcast %cst_85 : f32 to vector<8x128xf32>
    %194 = arith.subf %106, %193 : vector<8x128xf32>
    %cst_86 = arith.constant 0.000000e+00 : f32
    %195 = vector.broadcast %cst_86 : f32 to vector<8x128xf32>
    %196 = arith.maximumf %194, %195 : vector<8x128xf32>
    %cst_87 = arith.constant 1.600000e+00 : f32
    %197 = vector.broadcast %cst_87 : f32 to vector<8x128xf32>
    %198 = arith.subf %197, %106 : vector<8x128xf32>
    %cst_88 = arith.constant 0.000000e+00 : f32
    %199 = vector.broadcast %cst_88 : f32 to vector<8x128xf32>
    %200 = arith.maximumf %198, %199 : vector<8x128xf32>
    %201 = arith.mulf %196, %200 : vector<8x128xf32>
    %202 = arith.mulf %201, %201 : vector<8x128xf32>
    %cst_89 = arith.constant 3.906250e+01 : f32
    %203 = vector.broadcast %cst_89 : f32 to vector<8x128xf32>
    %204 = arith.mulf %202, %203 : vector<8x128xf32>
    %205 = tpu.concatenate %120, %132, %144, %156, %168, %180, %192, %204 in 1 : vector<8x128xf32>, vector<8x128xf32>, vector<8x128xf32>, vector<8x128xf32>, vector<8x128xf32>, vector<8x128xf32>, vector<8x128xf32>, vector<8x128xf32> -> vector<8x1024xf32>
    %cst_90 = arith.constant dense<0.000000e+00> : vector<8x256xf32>
    %206 = tpu.matmul %205, %107, %cst_90 {dimension_numbers = #tpu.dot_dimension_numbers<[1], [0], [0], [1], [0, 0, 1, 1], [], []>} : vector<8x1024xf32>, vector<1024x256xf32>, vector<8x256xf32> -> vector<8x256xf32>
    %207 = vector.broadcast %108 : vector<1x256xf32> to vector<8x256xf32>
    %208 = arith.addf %206, %207 : vector<8x256xf32>
    %209 = vector.extract_strided_slice %208 {offsets = [0, 128], sizes = [8, 128], strides = [1, 1]} : vector<8x256xf32> to vector<8x128xf32>
    %210 = arith.addf %105, %209 : vector<8x128xf32>
    %211 = vector.extract_strided_slice %208 {offsets = [0, 0], sizes = [8, 128], strides = [1, 1]} : vector<8x256xf32> to vector<8x128xf32>
    %c0_91 = arith.constant 0 : index
    %c0_92 = arith.constant 0 : index
    %212 = vector.load %arg6[%c0_91, %c0_92] : memref<1024x128xf32, #tpu.memory_space<vmem>>, vector<1024x128xf32>
    %c0_93 = arith.constant 0 : index
    %c0_94 = arith.constant 0 : index
    %213 = vector.load %arg7[%c0_93, %c0_94] : memref<1x128xf32, #tpu.memory_space<vmem>>, vector<1x128xf32>
    %cst_95 = arith.constant -6.000000e-01 : f32
    %214 = vector.broadcast %cst_95 : f32 to vector<8x128xf32>
    %215 = arith.subf %211, %214 : vector<8x128xf32>
    %cst_96 = arith.constant 0.000000e+00 : f32
    %216 = vector.broadcast %cst_96 : f32 to vector<8x128xf32>
    %217 = arith.maximumf %215, %216 : vector<8x128xf32>
    %cst_97 = arith.constant 2.000000e-01 : f32
    %218 = vector.broadcast %cst_97 : f32 to vector<8x128xf32>
    %219 = arith.subf %218, %211 : vector<8x128xf32>
    %cst_98 = arith.constant 0.000000e+00 : f32
    %220 = vector.broadcast %cst_98 : f32 to vector<8x128xf32>
    %221 = arith.maximumf %219, %220 : vector<8x128xf32>
    %222 = arith.mulf %217, %221 : vector<8x128xf32>
    %223 = arith.mulf %222, %222 : vector<8x128xf32>
    %cst_99 = arith.constant 3.906250e+01 : f32
    %224 = vector.broadcast %cst_99 : f32 to vector<8x128xf32>
    %225 = arith.mulf %223, %224 : vector<8x128xf32>
    %cst_100 = arith.constant -4.000000e-01 : f32
    %226 = vector.broadcast %cst_100 : f32 to vector<8x128xf32>
    %227 = arith.subf %211, %226 : vector<8x128xf32>
    %cst_101 = arith.constant 0.000000e+00 : f32
    %228 = vector.broadcast %cst_101 : f32 to vector<8x128xf32>
    %229 = arith.maximumf %227, %228 : vector<8x128xf32>
    %cst_102 = arith.constant 4.000000e-01 : f32
    %230 = vector.broadcast %cst_102 : f32 to vector<8x128xf32>
    %231 = arith.subf %230, %211 : vector<8x128xf32>
    %cst_103 = arith.constant 0.000000e+00 : f32
    %232 = vector.broadcast %cst_103 : f32 to vector<8x128xf32>
    %233 = arith.maximumf %231, %232 : vector<8x128xf32>
    %234 = arith.mulf %229, %233 : vector<8x128xf32>
    %235 = arith.mulf %234, %234 : vector<8x128xf32>
    %cst_104 = arith.constant 3.906250e+01 : f32
    %236 = vector.broadcast %cst_104 : f32 to vector<8x128xf32>
    %237 = arith.mulf %235, %236 : vector<8x128xf32>
    %cst_105 = arith.constant -2.000000e-01 : f32
    %238 = vector.broadcast %cst_105 : f32 to vector<8x128xf32>
    %239 = arith.subf %211, %238 : vector<8x128xf32>
    %cst_106 = arith.constant 0.000000e+00 : f32
    %240 = vector.broadcast %cst_106 : f32 to vector<8x128xf32>
    %241 = arith.maximumf %239, %240 : vector<8x128xf32>
    %cst_107 = arith.constant 6.000000e-01 : f32
    %242 = vector.broadcast %cst_107 : f32 to vector<8x128xf32>
    %243 = arith.subf %242, %211 : vector<8x128xf32>
    %cst_108 = arith.constant 0.000000e+00 : f32
    %244 = vector.broadcast %cst_108 : f32 to vector<8x128xf32>
    %245 = arith.maximumf %243, %244 : vector<8x128xf32>
    %246 = arith.mulf %241, %245 : vector<8x128xf32>
    %247 = arith.mulf %246, %246 : vector<8x128xf32>
    %cst_109 = arith.constant 3.906250e+01 : f32
    %248 = vector.broadcast %cst_109 : f32 to vector<8x128xf32>
    %249 = arith.mulf %247, %248 : vector<8x128xf32>
    %cst_110 = arith.constant 0.000000e+00 : f32
    %250 = vector.broadcast %cst_110 : f32 to vector<8x128xf32>
    %251 = arith.subf %211, %250 : vector<8x128xf32>
    %cst_111 = arith.constant 0.000000e+00 : f32
    %252 = vector.broadcast %cst_111 : f32 to vector<8x128xf32>
    %253 = arith.maximumf %251, %252 : vector<8x128xf32>
    %cst_112 = arith.constant 8.000000e-01 : f32
    %254 = vector.broadcast %cst_112 : f32 to vector<8x128xf32>
    %255 = arith.subf %254, %211 : vector<8x128xf32>
    %cst_113 = arith.constant 0.000000e+00 : f32
    %256 = vector.broadcast %cst_113 : f32 to vector<8x128xf32>
    %257 = arith.maximumf %255, %256 : vector<8x128xf32>
    %258 = arith.mulf %253, %257 : vector<8x128xf32>
    %259 = arith.mulf %258, %258 : vector<8x128xf32>
    %cst_114 = arith.constant 3.906250e+01 : f32
    %260 = vector.broadcast %cst_114 : f32 to vector<8x128xf32>
    %261 = arith.mulf %259, %260 : vector<8x128xf32>
    %cst_115 = arith.constant 2.000000e-01 : f32
    %262 = vector.broadcast %cst_115 : f32 to vector<8x128xf32>
    %263 = arith.subf %211, %262 : vector<8x128xf32>
    %cst_116 = arith.constant 0.000000e+00 : f32
    %264 = vector.broadcast %cst_116 : f32 to vector<8x128xf32>
    %265 = arith.maximumf %263, %264 : vector<8x128xf32>
    %cst_117 = arith.constant 1.000000e+00 : f32
    %266 = vector.broadcast %cst_117 : f32 to vector<8x128xf32>
    %267 = arith.subf %266, %211 : vector<8x128xf32>
    %cst_118 = arith.constant 0.000000e+00 : f32
    %268 = vector.broadcast %cst_118 : f32 to vector<8x128xf32>
    %269 = arith.maximumf %267, %268 : vector<8x128xf32>
    %270 = arith.mulf %265, %269 : vector<8x128xf32>
    %271 = arith.mulf %270, %270 : vector<8x128xf32>
    %cst_119 = arith.constant 3.906250e+01 : f32
    %272 = vector.broadcast %cst_119 : f32 to vector<8x128xf32>
    %273 = arith.mulf %271, %272 : vector<8x128xf32>
    %cst_120 = arith.constant 4.000000e-01 : f32
    %274 = vector.broadcast %cst_120 : f32 to vector<8x128xf32>
    %275 = arith.subf %211, %274 : vector<8x128xf32>
    %cst_121 = arith.constant 0.000000e+00 : f32
    %276 = vector.broadcast %cst_121 : f32 to vector<8x128xf32>
    %277 = arith.maximumf %275, %276 : vector<8x128xf32>
    %cst_122 = arith.constant 1.200000e+00 : f32
    %278 = vector.broadcast %cst_122 : f32 to vector<8x128xf32>
    %279 = arith.subf %278, %211 : vector<8x128xf32>
    %cst_123 = arith.constant 0.000000e+00 : f32
    %280 = vector.broadcast %cst_123 : f32 to vector<8x128xf32>
    %281 = arith.maximumf %279, %280 : vector<8x128xf32>
    %282 = arith.mulf %277, %281 : vector<8x128xf32>
    %283 = arith.mulf %282, %282 : vector<8x128xf32>
    %cst_124 = arith.constant 3.906250e+01 : f32
    %284 = vector.broadcast %cst_124 : f32 to vector<8x128xf32>
    %285 = arith.mulf %283, %284 : vector<8x128xf32>
    %cst_125 = arith.constant 6.000000e-01 : f32
    %286 = vector.broadcast %cst_125 : f32 to vector<8x128xf32>
    %287 = arith.subf %211, %286 : vector<8x128xf32>
    %cst_126 = arith.constant 0.000000e+00 : f32
    %288 = vector.broadcast %cst_126 : f32 to vector<8x128xf32>
    %289 = arith.maximumf %287, %288 : vector<8x128xf32>
    %cst_127 = arith.constant 1.400000e+00 : f32
    %290 = vector.broadcast %cst_127 : f32 to vector<8x128xf32>
    %291 = arith.subf %290, %211 : vector<8x128xf32>
    %cst_128 = arith.constant 0.000000e+00 : f32
    %292 = vector.broadcast %cst_128 : f32 to vector<8x128xf32>
    %293 = arith.maximumf %291, %292 : vector<8x128xf32>
    %294 = arith.mulf %289, %293 : vector<8x128xf32>
    %295 = arith.mulf %294, %294 : vector<8x128xf32>
    %cst_129 = arith.constant 3.906250e+01 : f32
    %296 = vector.broadcast %cst_129 : f32 to vector<8x128xf32>
    %297 = arith.mulf %295, %296 : vector<8x128xf32>
    %cst_130 = arith.constant 8.000000e-01 : f32
    %298 = vector.broadcast %cst_130 : f32 to vector<8x128xf32>
    %299 = arith.subf %211, %298 : vector<8x128xf32>
    %cst_131 = arith.constant 0.000000e+00 : f32
    %300 = vector.broadcast %cst_131 : f32 to vector<8x128xf32>
    %301 = arith.maximumf %299, %300 : vector<8x128xf32>
    %cst_132 = arith.constant 1.600000e+00 : f32
    %302 = vector.broadcast %cst_132 : f32 to vector<8x128xf32>
    %303 = arith.subf %302, %211 : vector<8x128xf32>
    %cst_133 = arith.constant 0.000000e+00 : f32
    %304 = vector.broadcast %cst_133 : f32 to vector<8x128xf32>
    %305 = arith.maximumf %303, %304 : vector<8x128xf32>
    %306 = arith.mulf %301, %305 : vector<8x128xf32>
    %307 = arith.mulf %306, %306 : vector<8x128xf32>
    %cst_134 = arith.constant 3.906250e+01 : f32
    %308 = vector.broadcast %cst_134 : f32 to vector<8x128xf32>
    %309 = arith.mulf %307, %308 : vector<8x128xf32>
    %310 = tpu.concatenate %225, %237, %249, %261, %273, %285, %297, %309 in 1 : vector<8x128xf32>, vector<8x128xf32>, vector<8x128xf32>, vector<8x128xf32>, vector<8x128xf32>, vector<8x128xf32>, vector<8x128xf32>, vector<8x128xf32> -> vector<8x1024xf32>
    %cst_135 = arith.constant dense<0.000000e+00> : vector<8x128xf32>
    %311 = tpu.matmul %310, %212, %cst_135 {dimension_numbers = #tpu.dot_dimension_numbers<[1], [0], [0], [1], [0, 0, 1, 1], [], []>} : vector<8x1024xf32>, vector<1024x128xf32>, vector<8x128xf32> -> vector<8x128xf32>
    %312 = arith.addf %210, %311 : vector<8x128xf32>
    %313 = vector.broadcast %213 : vector<1x128xf32> to vector<8x128xf32>
    %314 = arith.addf %312, %313 : vector<8x128xf32>
    %c0_136 = arith.constant 0 : index
    %c0_137 = arith.constant 0 : index
    %315 = vector.load %arg8[%c0_136, %c0_137] : memref<8x128xf32, #tpu.memory_space<vmem>>, vector<8x128xf32>
    tpu.vector_store %arg8[%c0_136, %c0_137], %314 {strides = array<i32>} : memref<8x128xf32, #tpu.memory_space<vmem>>, vector<8x128xf32>,
    return
  }
  func.func @transform_0(%arg0: i32) -> (i32, i32) {
    %c0_i32 = arith.constant 0 : i32
    %c0_i32_0 = arith.constant 0 : i32
    return %arg0, %c0_i32 : i32, i32
  }
  func.func @transform_1(%arg0: i32) -> (i32, i32) {
    %c0_i32 = arith.constant 0 : i32
    %c0_i32_0 = arith.constant 0 : i32
    %c0_i32_1 = arith.constant 0 : i32
    return %c0_i32, %c0_i32_0 : i32, i32
  }
  func.func @transform_2(%arg0: i32) -> (i32, i32) {
    %c0_i32 = arith.constant 0 : i32
    %c0_i32_0 = arith.constant 0 : i32
    %c0_i32_1 = arith.constant 0 : i32
    return %c0_i32, %c0_i32_0 : i32, i32
  }
  func.func @transform_3(%arg0: i32) -> (i32, i32) {
    %c0_i32 = arith.constant 0 : i32
    %c0_i32_0 = arith.constant 0 : i32
    %c0_i32_1 = arith.constant 0 : i32
    return %c0_i32, %c0_i32_0 : i32, i32
  }
  func.func @transform_4(%arg0: i32) -> (i32, i32) {
    %c0_i32 = arith.constant 0 : i32
    %c0_i32_0 = arith.constant 0 : i32
    %c0_i32_1 = arith.constant 0 : i32
    return %c0_i32, %c0_i32_0 : i32, i32
  }
  func.func @transform_5(%arg0: i32) -> (i32, i32) {
    %c0_i32 = arith.constant 0 : i32
    %c0_i32_0 = arith.constant 0 : i32
    %c0_i32_1 = arith.constant 0 : i32
    return %c0_i32, %c0_i32_0 : i32, i32
  }
  func.func @transform_6(%arg0: i32) -> (i32, i32) {
    %c0_i32 = arith.constant 0 : i32
    %c0_i32_0 = arith.constant 0 : i32
    %c0_i32_1 = arith.constant 0 : i32
    return %c0_i32, %c0_i32_0 : i32, i32
  }
  func.func @transform_7(%arg0: i32) -> (i32, i32) {
    %c0_i32 = arith.constant 0 : i32
    %c0_i32_0 = arith.constant 0 : i32
    return %arg0, %c0_i32 : i32, i32
  }
}

</mosaic_0001>

<llo_original>
// kernel: tpu_custom_call.1
$region0: #{tpu_custom_call.1}
  #allocation0 [shape = 'u32[]', space=smem, size = 0x4, offset = 0x4, fixed_abs, tag = 'smem constant byte address 0x4 - core index']
  #allocation1 [shape = 'u32[72,128]{1,0:T(1,128)}', space=vmem, size = 0x9000, scoped, tag = 'internal scratch']
  %s0 = inlined_call_operand.hbm [shape: f32[8,128], index: 0, kind: input, shape index: {}]
  %s1 = inlined_call_operand.hbm [shape: f32[1024,256], index: 1, kind: input, shape index: {}]
  %s2 = inlined_call_operand.hbm [shape: f32[1,256], index: 2, kind: input, shape index: {}]
  %s3 = inlined_call_operand.hbm [shape: f32[1024,256], index: 3, kind: input, shape index: {}]
  %s4 = inlined_call_operand.vmem [shape: f32[1,256], index: 4, kind: input, shape index: {}]
  %s5 = inlined_call_operand.hbm [shape: f32[1024,128], index: 5, kind: input, shape index: {}]
  %s6 = inlined_call_operand.vmem [shape: f32[1,128], index: 6, kind: input, shape index: {}]
  %s7 = inlined_call_operand.hbm [shape: f32[8,128], index: 7, kind: output, shape index: {}]
  %s8 = sld [smem:[#allocation0]]
  $region58: #{tpu_custom_call.1} parent=0
    _
  %s10 = ssub.s32 1, %s8
  %s11 = scalar_select 0, %s10, %s8
  $region1: #{tpu_custom_call.1} parent=0
    #allocation2 [shape = 'u8[4096]{0}', space=vmem, size = 0x1000, scoped, tag = 'input window, operand 0, single buffered']
    #allocation3 [shape = 's32[1]{0}', space=sflag, size = 0x4, scoped, tag = 'scoped memory for tpu_custom_call.1']
    #allocation4 [shape = 's32[1]{0}', space=sflag, size = 0x4, scoped, tag = 'scoped memory for tpu_custom_call.1']
    #allocation5 [shape = 'u8[1048576]{0}', space=vmem, size = 0x100000, scoped, tag = 'input window, operand 1, single buffered']
    #allocation6 [shape = 's32[1]{0}', space=sflag, size = 0x4, scoped, tag = 'scoped memory for tpu_custom_call.1']
    #allocation7 [shape = 'u8[1024]{0}', space=vmem, size = 0x400, scoped, tag = 'input window, operand 2, single buffered']
    #allocation8 [shape = 'u8[1048576]{0}', space=vmem, size = 0x100000, scoped, tag = 'input window, operand 3, single buffered']
    #allocation9 [shape = 's32[1]{0}', space=sflag, size = 0x4, scoped, tag = 'scoped memory for tpu_custom_call.1']
    #allocation10 [shape = 'u8[524288]{0}', space=vmem, size = 0x80000, scoped, tag = 'input window, operand 5, single buffered']
    #allocation11 [shape = 'u8[4096]{0}', space=vmem, size = 0x1000, scoped, tag = 'output window, operand 0, single buffered']
    %12 = vsyncpa [#allocation3], 0
    %13 = vsyncpa [#allocation6], 0
    %14 = vsyncpa [#allocation9], 0
    %15 = vsyncpa [#allocation4], 0
    // Predicated region
    $region2: #{tpu_custom_call.1} parent=1 // pred_check
      _
    $region3: #{tpu_custom_call.1} parent=1 // pred_check_branch
      %17 = sbr.rel (0) target = $region5
    $region4: #{tpu_custom_call.1} parent=1 // pred_region
      %19 = vsyncadd [#allocation3], 0
      %s21 = sshll.u32 %s0, 4
      %s22 = int_to_ptr.hbm [resolvable:$true] %s21
      %s23 = sshll.u32 [#allocation2], 4
      %s24 = int_to_ptr.vmem [resolvable:$true] %s23
      %26 = dma.hbm_to_vmem [thread:$0]  %s22, 128, %s24, [#allocation3]
    $region5: #{tpu_custom_call.1} parent=1 // pred_fallthru
      _
    // Predicated region
    $region6: #{tpu_custom_call.1} parent=1 // pred_check
      _
    $region7: #{tpu_custom_call.1} parent=1 // pred_check_branch
      %28 = sbr.rel (0) target = $region9
    $region8: #{tpu_custom_call.1} parent=1 // pred_region
      %30 = vsyncadd [#allocation6], 0
      %s31 = sshll.u32 %s1, 4
      %s32 = int_to_ptr.hbm [resolvable:$true] %s31
      %s33 = sshll.u32 [#allocation5], 4
      %s34 = int_to_ptr.vmem [resolvable:$true] %s33
      %39 = dma.hbm_to_vmem [thread:$0]  %s32, 32768, %s34, [#allocation6], 256, 256, 16
    $region9: #{tpu_custom_call.1} parent=1 // pred_fallthru
      _
    // Predicated region
    $region10: #{tpu_custom_call.1} parent=1 // pred_check
      _
    $region11: #{tpu_custom_call.1} parent=1 // pred_check_branch
      %41 = sbr.rel (0) target = $region13
    $region12: #{tpu_custom_call.1} parent=1 // pred_region
      %43 = vsyncadd [#allocation6], 0
      %s45 = sshll.u32 %s2, 4
      %s46 = int_to_ptr.hbm [resolvable:$true] %s45
      %s47 = sshll.u32 [#allocation7], 4
      %s48 = int_to_ptr.vmem [resolvable:$true] %s47
      %50 = dma.hbm_to_vmem [thread:$0]  %s46, 32, %s48, [#allocation6]
    $region13: #{tpu_custom_call.1} parent=1 // pred_fallthru
      _
    // Predicated region
    $region14: #{tpu_custom_call.1} parent=1 // pred_check
      _
    $region15: #{tpu_custom_call.1} parent=1 // pred_check_branch
      %52 = sbr.rel (0) target = $region17
    $region16: #{tpu_custom_call.1} parent=1 // pred_region
      %54 = vsyncadd [#allocation9], 0
      %s55 = sshll.u32 %s3, 4
      %s56 = int_to_ptr.hbm [resolvable:$true] %s55
      %s57 = sshll.u32 [#allocation8], 4
      %s58 = int_to_ptr.vmem [resolvable:$true] %s57
      %63 = dma.hbm_to_vmem [thread:$0]  %s56, 32768, %s58, [#allocation9], 256, 256, 16
    $region17: #{tpu_custom_call.1} parent=1 // pred_fallthru
      _
    // Predicated region
    $region18: #{tpu_custom_call.1} parent=1 // pred_check
      _
    $region19: #{tpu_custom_call.1} parent=1 // pred_check_branch
      %65 = sbr.rel (0) target = $region21
    $region20: #{tpu_custom_call.1} parent=1 // pred_region
      _
    $region21: #{tpu_custom_call.1} parent=1 // pred_fallthru
      _
    // Predicated region
    $region22: #{tpu_custom_call.1} parent=1 // pred_check
      _
    $region23: #{tpu_custom_call.1} parent=1 // pred_check_branch
      %67 = sbr.rel (0) target = $region25
    $region24: #{tpu_custom_call.1} parent=1 // pred_region
      %69 = vsyncadd [#allocation9], 0
      %s70 = sshll.u32 %s5, 4
      %s71 = int_to_ptr.hbm [resolvable:$true] %s70
      %s72 = sshll.u32 [#allocation10], 4
      %s73 = int_to_ptr.vmem [resolvable:$true] %s72
      %78 = dma.hbm_to_vmem [thread:$0]  %s71, 16384, %s73, [#allocation9], 128, 128, 8
    $region25: #{tpu_custom_call.1} parent=1 // pred_fallthru
      _
    // Predicated region
    $region26: #{tpu_custom_call.1} parent=1 // pred_check
      _
    $region27: #{tpu_custom_call.1} parent=1 // pred_check_branch
      %80 = sbr.rel (0) target = $region29
    $region28: #{tpu_custom_call.1} parent=1 // pred_region
      _
    $region29: #{tpu_custom_call.1} parent=1 // pred_fallthru
      _
    // Predicated region
    $region30: #{tpu_custom_call.1} parent=1 // pred_check
      _
    $region31: #{tpu_custom_call.1} parent=1 // pred_check_branch
      %82 = sbr.rel (0) target = $region33
    $region32: #{tpu_custom_call.1} parent=1 // pred_region
      %84 = dma.done [#allocation3], 128
    $region33: #{tpu_custom_call.1} parent=1 // pred_fallthru
      _
    // Predicated region
    $region34: #{tpu_custom_call.1} parent=1 // pred_check
      _
    $region35: #{tpu_custom_call.1} parent=1 // pred_check_branch
      %86 = sbr.rel (0) target = $region37
    $region36: #{tpu_custom_call.1} parent=1 // pred_region
      %88 = dma.done [#allocation6], 32768
    $region37: #{tpu_custom_call.1} parent=1 // pred_fallthru
      _
    // Predicated region
    $region38: #{tpu_custom_call.1} parent=1 // pred_check
      _
    $region39: #{tpu_custom_call.1} parent=1 // pred_check_branch
      %90 = sbr.rel (0) target = $region41
    $region40: #{tpu_custom_call.1} parent=1 // pred_region
      %92 = dma.done [#allocation6], 32
    $region41: #{tpu_custom_call.1} parent=1 // pred_fallthru
      _
    // Predicated region
    $region42: #{tpu_custom_call.1} parent=1 // pred_check
      _
    $region43: #{tpu_custom_call.1} parent=1 // pred_check_branch
      %94 = sbr.rel (0) target = $region45
    $region44: #{tpu_custom_call.1} parent=1 // pred_region
      %96 = dma.done [#allocation9], 32768
    $region45: #{tpu_custom_call.1} parent=1 // pred_fallthru
      _
    // Predicated region
    $region46: #{tpu_custom_call.1} parent=1 // pred_check
      _
    $region47: #{tpu_custom_call.1} parent=1 // pred_check_branch
      %98 = sbr.rel (0) target = $region49
    $region48: #{tpu_custom_call.1} parent=1 // pred_region
      %100 = dma.done [#allocation9], 16384
    $region49: #{tpu_custom_call.1} parent=1 // pred_fallthru
      _
    %v101 = vld [vmem:[#allocation2] sm:$0xff]
    %v102 = vld [vmem:[#allocation5] sm:$0xff]
    %v103 = vld [vmem:[#allocation5 + $0x8] sm:$0xff]
    %v104 = vld [vmem:[#allocation5 + $0x10] sm:$0xff]
    %v105 = vld [vmem:[#allocation5 + $0x18] sm:$0xff]
    %v106 = vld [vmem:[#allocation5 + $0x20] sm:$0xff]
    %v107 = vld [vmem:[#allocation5 + $0x28] sm:$0xff]
    %v108 = vld [vmem:[#allocation5 + $0x30] sm:$0xff]
    %v109 = vld [vmem:[#allocation5 + $0x38] sm:$0xff]
    %v110 = vld [vmem:[#allocation5 + $0x40] sm:$0xff]
    %v111 = vld [vmem:[#allocation5 + $0x48] sm:$0xff]
    %v112 = vld [vmem:[#allocation5 + $0x50] sm:$0xff]
    %v113 = vld [vmem:[#allocation5 + $0x58] sm:$0xff]
    %v114 = vld [vmem:[#allocation5 + $0x60] sm:$0xff]
    %v115 = vld [vmem:[#allocation5 + $0x68] sm:$0xff]
    %v116 = vld [vmem:[#allocation5 + $0x70] sm:$0xff]
    %v117 = vld [vmem:[#allocation5 + $0x78] sm:$0xff]
    %v118 = vld [vmem:[#allocation5 + $0x80] sm:$0xff]
    %v119 = vld [vmem:[#allocation5 + $0x88] sm:$0xff]
    %v120 = vld [vmem:[#allocation5 + $0x90] sm:$0xff]
    %v121 = vld [vmem:[#allocation5 + $0x98] sm:$0xff]
    %v122 = vld [vmem:[#allocation5 + $0xa0] sm:$0xff]
    %v123 = vld [vmem:[#allocation5 + $0xa8] sm:$0xff]
    %v124 = vld [vmem:[#allocation5 + $0xb0] sm:$0xff]
    %v125 = vld [vmem:[#allocation5 + $0xb8] sm:$0xff]
    %v126 = vld [vmem:[#allocation5 + $0xc0] sm:$0xff]
    %v127 = vld [vmem:[#allocation5 + $0xc8] sm:$0xff]
    %v128 = vld [vmem:[#allocation5 + $0xd0] sm:$0xff]
    %v129 = vld [vmem:[#allocation5 + $0xd8] sm:$0xff]
    %v130 = vld [vmem:[#allocation5 + $0xe0] sm:$0xff]
    %v131 = vld [vmem:[#allocation5 + $0xe8] sm:$0xff]
    %v132 = vld [vmem:[#allocation5 + $0xf0] sm:$0xff]
    %v133 = vld [vmem:[#allocation5 + $0xf8] sm:$0xff]
    %v134 = vld [vmem:[#allocation5 + $0x100] sm:$0xff]
    %v135 = vld [vmem:[#allocation5 + $0x108] sm:$0xff]
    %v136 = vld [vmem:[#allocation5 + $0x110] sm:$0xff]
    %v137 = vld [vmem:[#allocation5 + $0x118] sm:$0xff]
    %v138 = vld [vmem:[#allocation5 + $0x120] sm:$0xff]
    %v139 = vld [vmem:[#allocation5 + $0x128] sm:$0xff]
    %v140 = vld [vmem:[#allocation5 + $0x130] sm:$0xff]
    %v141 = vld [vmem:[#allocation5 + $0x138] sm:$0xff]
    %v142 = vld [vmem:[#allocation5 + $0x140] sm:$0xff]
    %v143 = vld [vmem:[#allocation5 + $0x148] sm:$0xff]
    %v144 = vld [vmem:[#allocation5 + $0x150] sm:$0xff]
    %v145 = vld [vmem:[#allocation5 + $0x158] sm:$0xff]
    %v146 = vld [vmem:[#allocation5 + $0x160] sm:$0xff]
    %v147 = vld [vmem:[#allocation5 + $0x168] sm:$0xff]
    %v148 = vld [vmem:[#allocation5 + $0x170] sm:$0xff]
    %v149 = vld [vmem:[#allocation5 + $0x178] sm:$0xff]
    %v150 = vld [vmem:[#allocation5 + $0x180] sm:$0xff]
    %v151 = vld [vmem:[#allocation5 + $0x188] sm:$0xff]
    %v152 = vld [vmem:[#allocation5 + $0x190] sm:$0xff]
    %v153 = vld [vmem:[#allocation5 + $0x198] sm:$0xff]
    %v154 = vld [vmem:[#allocation5 + $0x1a0] sm:$0xff]
    %v155 = vld [vmem:[#allocation5 + $0x1a8] sm:$0xff]
    %v156 = vld [vmem:[#allocation5 + $0x1b0] sm:$0xff]
    %v157 = vld [vmem:[#allocation5 + $0x1b8] sm:$0xff]
    %v158 = vld [vmem:[#allocation5 + $0x1c0] sm:$0xff]
    %v159 = vld [vmem:[#allocation5 + $0x1c8] sm:$0xff]
    %v160 = vld [vmem:[#allocation5 + $0x1d0] sm:$0xff]
    %v161 = vld [vmem:[#allocation5 + $0x1d8] sm:$0xff]
    %v162 = vld [vmem:[#allocation5 + $0x1e0] sm:$0xff]
    %v163 = vld [vmem:[#allocation5 + $0x1e8] sm:$0xff]
    %v164 = vld [vmem:[#allocation5 + $0x1f0] sm:$0xff]
    %v165 = vld [vmem:[#allocation5 + $0x1f8] sm:$0xff]
    %v166 = vld [vmem:[#allocation5 + $0x200] sm:$0xff]
    %v167 = vld [vmem:[#allocation5 + $0x208] sm:$0xff]
    %v168 = vld [vmem:[#allocation5 + $0x210] sm:$0xff]
    %v169 = vld [vmem:[#allocation5 + $0x218] sm:$0xff]
    %v170 = vld [vmem:[#allocation5 + $0x220] sm:$0xff]
    %v171 = vld [vmem:[#allocation5 + $0x228] sm:$0xff]
    %v172 = vld [vmem:[#allocation5 + $0x230] sm:$0xff]
    %v173 = vld [vmem:[#allocation5 + $0x238] sm:$0xff]
    %v174 = vld [vmem:[#allocation5 + $0x240] sm:$0xff]
    %v175 = vld [vmem:[#allocation5 + $0x248] sm:$0xff]
    %v176 = vld [vmem:[#allocation5 + $0x250] sm:$0xff]
    %v177 = vld [vmem:[#allocation5 + $0x258] sm:$0xff]
    %v178 = vld [vmem:[#allocation5 + $0x260] sm:$0xff]
    %v179 = vld [vmem:[#allocation5 + $0x268] sm:$0xff]
    %v180 = vld [vmem:[#allocation5 + $0x270] sm:$0xff]
    %v181 = vld [vmem:[#allocation5 + $0x278] sm:$0xff]
    %v182 = vld [vmem:[#allocation5 + $0x280] sm:$0xff]
    %v183 = vld [vmem:[#allocation5 + $0x288] sm:$0xff]
    %v184 = vld [vmem:[#allocation5 + $0x290] sm:$0xff]
    %v185 = vld [vmem:[#allocation5 + $0x298] sm:$0xff]
    %v186 = vld [vmem:[#allocation5 + $0x2a0] sm:$0xff]
    %v187 = vld [vmem:[#allocation5 + $0x2a8] sm:$0xff]
    %v188 = vld [vmem:[#allocation5 + $0x2b0] sm:$0xff]
    %v189 = vld [vmem:[#allocation5 + $0x2b8] sm:$0xff]
    %v190 = vld [vmem:[#allocation5 + $0x2c0] sm:$0xff]
    %v191 = vld [vmem:[#allocation5 + $0x2c8] sm:$0xff]
    %v192 = vld [vmem:[#allocation5 + $0x2d0] sm:$0xff]
    %v193 = vld [vmem:[#allocation5 + $0x2d8] sm:$0xff]
    %v194 = vld [vmem:[#allocation5 + $0x2e0] sm:$0xff]
    %v195 = vld [vmem:[#allocation5 + $0x2e8] sm:$0xff]
    %v196 = vld [vmem:[#allocation5 + $0x2f0] sm:$0xff]
    %v197 = vld [vmem:[#allocation5 + $0x2f8] sm:$0xff]
    %v198 = vld [vmem:[#allocation5 + $0x300] sm:$0xff]
    %v199 = vld [vmem:[#allocation5 + $0x308] sm:$0xff]
    %v200 = vld [vmem:[#allocation5 + $0x310] sm:$0xff]
    %v201 = vld [vmem:[#allocation5 + $0x318] sm:$0xff]
    %v202 = vld [vmem:[#allocation5 + $0x320] sm:$0xff]
    %v203 = vld [vmem:[#allocation5 + $0x328] sm:$0xff]
    %v204 = vld [vmem:[#allocation5 + $0x330] sm:$0xff]
    %v205 = vld [vmem:[#allocation5 + $0x338] sm:$0xff]
    %v206 = vld [vmem:[#allocation5 + $0x340] sm:$0xff]
    %v207 = vld [vmem:[#allocation5 + $0x348] sm:$0xff]
    %v208 = vld [vmem:[#allocation5 + $0x350] sm:$0xff]
    %v209 = vld [vmem:[#allocation5 + $0x358] sm:$0xff]
    %v210 = vld [vmem:[#allocation5 + $0x360] sm:$0xff]
    %v211 = vld [vmem:[#allocation5 + $0x368] sm:$0xff]
    %v212 = vld [vmem:[#allocation5 + $0x370] sm:$0xff]
    %v213 = vld [vmem:[#allocation5 + $0x378] sm:$0xff]
    %v214 = vld [vmem:[#allocation5 + $0x380] sm:$0xff]
    %v215 = vld [vmem:[#allocation5 + $0x388] sm:$0xff]
    %v216 = vld [vmem:[#allocation5 + $0x390] sm:$0xff]
    %v217 = vld [vmem:[#allocation5 + $0x398] sm:$0xff]
    %v218 = vld [vmem:[#allocation5 + $0x3a0] sm:$0xff]
    %v219 = vld [vmem:[#allocation5 + $0x3a8] sm:$0xff]
    %v220 = vld [vmem:[#allocation5 + $0x3b0] sm:$0xff]
    %v221 = vld [vmem:[#allocation5 + $0x3b8] sm:$0xff]
    %v222 = vld [vmem:[#allocation5 + $0x3c0] sm:$0xff]
    %v223 = vld [vmem:[#allocation5 + $0x3c8] sm:$0xff]
    %v224 = vld [vmem:[#allocation5 + $0x3d0] sm:$0xff]
    %v225 = vld [vmem:[#allocation5 + $0x3d8] sm:$0xff]
    %v226 = vld [vmem:[#allocation5 + $0x3e0] sm:$0xff]
    %v227 = vld [vmem:[#allocation5 + $0x3e8] sm:$0xff]
    %v228 = vld [vmem:[#allocation5 + $0x3f0] sm:$0xff]
    %v229 = vld [vmem:[#allocation5 + $0x3f8] sm:$0xff]
    %v230 = vld [vmem:[#allocation5 + $0x400] sm:$0xff]
    %v231 = vld [vmem:[#allocation5 + $0x408] sm:$0xff]
    %v232 = vld [vmem:[#allocation5 + $0x410] sm:$0xff]
    %v233 = vld [vmem:[#allocation5 + $0x418] sm:$0xff]
    %v234 = vld [vmem:[#allocation5 + $0x420] sm:$0xff]
    %v235 = vld [vmem:[#allocation5 + $0x428] sm:$0xff]
    %v236 = vld [vmem:[#allocation5 + $0x430] sm:$0xff]
    %v237 = vld [vmem:[#allocation5 + $0x438] sm:$0xff]
    %v238 = vld [vmem:[#allocation5 + $0x440] sm:$0xff]
    %v239 = vld [vmem:[#allocation5 + $0x448] sm:$0xff]
    %v240 = vld [vmem:[#allocation5 + $0x450] sm:$0xff]
    %v241 = vld [vmem:[#allocation5 + $0x458] sm:$0xff]
    %v242 = vld [vmem:[#allocation5 + $0x460] sm:$0xff]
    %v243 = vld [vmem:[#allocation5 + $0x468] sm:$0xff]
    %v244 = vld [vmem:[#allocation5 + $0x470] sm:$0xff]
    %v245 = vld [vmem:[#allocation5 + $0x478] sm:$0xff]
    %v246 = vld [vmem:[#allocation5 + $0x480] sm:$0xff]
    %v247 = vld [vmem:[#allocation5 + $0x488] sm:$0xff]
    %v248 = vld [vmem:[#allocation5 + $0x490] sm:$0xff]
    %v249 = vld [vmem:[#allocation5 + $0x498] sm:$0xff]
    %v250 = vld [vmem:[#allocation5 + $0x4a0] sm:$0xff]
    %v251 = vld [vmem:[#allocation5 + $0x4a8] sm:$0xff]
    %v252 = vld [vmem:[#allocation5 + $0x4b0] sm:$0xff]
    %v253 = vld [vmem:[#allocation5 + $0x4b8] sm:$0xff]
    %v254 = vld [vmem:[#allocation5 + $0x4c0] sm:$0xff]
    %v255 = vld [vmem:[#allocation5 + $0x4c8] sm:$0xff]
    %v256 = vld [vmem:[#allocation5 + $0x4d0] sm:$0xff]
    %v257 = vld [vmem:[#allocation5 + $0x4d8] sm:$0xff]
    %v258 = vld [vmem:[#allocation5 + $0x4e0] sm:$0xff]
    %v259 = vld [vmem:[#allocation5 + $0x4e8] sm:$0xff]
    %v260 = vld [vmem:[#allocation5 + $0x4f0] sm:$0xff]
    %v261 = vld [vmem:[#allocation5 + $0x4f8] sm:$0xff]
    %v262 = vld [vmem:[#allocation5 + $0x500] sm:$0xff]
    %v263 = vld [vmem:[#allocation5 + $0x508] sm:$0xff]
    %v264 = vld [vmem:[#allocation5 + $0x510] sm:$0xff]
    %v265 = vld [vmem:[#allocation5 + $0x518] sm:$0xff]
    %v266 = vld [vmem:[#allocation5 + $0x520] sm:$0xff]
    %v267 = vld [vmem:[#allocation5 + $0x528] sm:$0xff]
    %v268 = vld [vmem:[#allocation5 + $0x530] sm:$0xff]
    %v269 = vld [vmem:[#allocation5 + $0x538] sm:$0xff]
    %v270 = vld [vmem:[#allocation5 + $0x540] sm:$0xff]
    %v271 = vld [vmem:[#allocation5 + $0x548] sm:$0xff]
    %v272 = vld [vmem:[#allocation5 + $0x550] sm:$0xff]
    %v273 = vld [vmem:[#allocation5 + $0x558] sm:$0xff]
    %v274 = vld [vmem:[#allocation5 + $0x560] sm:$0xff]
    %v275 = vld [vmem:[#allocation5 + $0x568] sm:$0xff]
    %v276 = vld [vmem:[#allocation5 + $0x570] sm:$0xff]
    %v277 = vld [vmem:[#allocation5 + $0x578] sm:$0xff]
    %v278 = vld [vmem:[#allocation5 + $0x580] sm:$0xff]
    %v279 = vld [vmem:[#allocation5 + $0x588] sm:$0xff]
    %v280 = vld [vmem:[#allocation5 + $0x590] sm:$0xff]
    %v281 = vld [vmem:[#allocation5 + $0x598] sm:$0xff]
    %v282 = vld [vmem:[#allocation5 + $0x5a0] sm:$0xff]
    %v283 = vld [vmem:[#allocation5 + $0x5a8] sm:$0xff]
    %v284 = vld [vmem:[#allocation5 + $0x5b0] sm:$0xff]
    %v285 = vld [vmem:[#allocation5 + $0x5b8] sm:$0xff]
    %v286 = vld [vmem:[#allocation5 + $0x5c0] sm:$0xff]
    %v287 = vld [vmem:[#allocation5 + $0x5c8] sm:$0xff]
    %v288 = vld [vmem:[#allocation5 + $0x5d0] sm:$0xff]
    %v289 = vld [vmem:[#allocation5 + $0x5d8] sm:$0xff]
    %v290 = vld [vmem:[#allocation5 + $0x5e0] sm:$0xff]
    %v291 = vld [vmem:[#allocation5 + $0x5e8] sm:$0xff]
    %v292 = vld [vmem:[#allocation5 + $0x5f0] sm:$0xff]
    %v293 = vld [vmem:[#allocation5 + $0x5f8] sm:$0xff]
    %v294 = vld [vmem:[#allocation5 + $0x600] sm:$0xff]
    %v295 = vld [vmem:[#allocation5 + $0x608] sm:$0xff]
    %v296 = vld [vmem:[#allocation5 + $0x610] sm:$0xff]
    %v297 = vld [vmem:[#allocation5 + $0x618] sm:$0xff]
    %v298 = vld [vmem:[#allocation5 + $0x620] sm:$0xff]
    %v299 = vld [vmem:[#allocation5 + $0x628] sm:$0xff]
    %v300 = vld [vmem:[#allocation5 + $0x630] sm:$0xff]
    %v301 = vld [vmem:[#allocation5 + $0x638] sm:$0xff]
    %v302 = vld [vmem:[#allocation5 + $0x640] sm:$0xff]
    %v303 = vld [vmem:[#allocation5 + $0x648] sm:$0xff]
    %v304 = vld [vmem:[#allocation5 + $0x650] sm:$0xff]
    %v305 = vld [vmem:[#allocation5 + $0x658] sm:$0xff]
    %v306 = vld [vmem:[#allocation5 + $0x660] sm:$0xff]
    %v307 = vld [vmem:[#allocation5 + $0x668] sm:$0xff]
    %v308 = vld [vmem:[#allocation5 + $0x670] sm:$0xff]
    %v309 = vld [vmem:[#allocation5 + $0x678] sm:$0xff]
    %v310 = vld [vmem:[#allocation5 + $0x680] sm:$0xff]
    %v311 = vld [vmem:[#allocation5 + $0x688] sm:$0xff]
    %v312 = vld [vmem:[#allocation5 + $0x690] sm:$0xff]
    %v313 = vld [vmem:[#allocation5 + $0x698] sm:$0xff]
    %v314 = vld [vmem:[#allocation5 + $0x6a0] sm:$0xff]
    %v315 = vld [vmem:[#allocation5 + $0x6a8] sm:$0xff]
    %v316 = vld [vmem:[#allocation5 + $0x6b0] sm:$0xff]
    %v317 = vld [vmem:[#allocation5 + $0x6b8] sm:$0xff]
    %v318 = vld [vmem:[#allocation5 + $0x6c0] sm:$0xff]
    %v319 = vld [vmem:[#allocation5 + $0x6c8] sm:$0xff]
    %v320 = vld [vmem:[#allocation5 + $0x6d0] sm:$0xff]
    %v321 = vld [vmem:[#allocation5 + $0x6d8] sm:$0xff]
    %v322 = vld [vmem:[#allocation5 + $0x6e0] sm:$0xff]
    %v323 = vld [vmem:[#allocation5 + $0x6e8] sm:$0xff]
    %v324 = vld [vmem:[#allocation5 + $0x6f0] sm:$0xff]
    %v325 = vld [vmem:[#allocation5 + $0x6f8] sm:$0xff]
    %v326 = vld [vmem:[#allocation5 + $0x700] sm:$0xff]
    %v327 = vld [vmem:[#allocation5 + $0x708] sm:$0xff]
    %v328 = vld [vmem:[#allocation5 + $0x710] sm:$0xff]
    %v329 = vld [vmem:[#allocation5 + $0x718] sm:$0xff]
    %v330 = vld [vmem:[#allocation5 + $0x720] sm:$0xff]
    %v331 = vld [vmem:[#allocation5 + $0x728] sm:$0xff]
    %v332 = vld [vmem:[#allocation5 + $0x730] sm:$0xff]
    %v333 = vld [vmem:[#allocation5 + $0x738] sm:$0xff]
    %v334 = vld [vmem:[#allocation5 + $0x740] sm:$0xff]
    %v335 = vld [vmem:[#allocation5 + $0x748] sm:$0xff]
    %v336 = vld [vmem:[#allocation5 + $0x750] sm:$0xff]
    %v337 = vld [vmem:[#allocation5 + $0x758] sm:$0xff]
    %v338 = vld [vmem:[#allocation5 + $0x760] sm:$0xff]
    %v339 = vld [vmem:[#allocation5 + $0x768] sm:$0xff]
    %v340 = vld [vmem:[#allocation5 + $0x770] sm:$0xff]
    %v341 = vld [vmem:[#allocation5 + $0x778] sm:$0xff]
    %v342 = vld [vmem:[#allocation5 + $0x780] sm:$0xff]
    %v343 = vld [vmem:[#allocation5 + $0x788] sm:$0xff]
    %v344 = vld [vmem:[#allocation5 + $0x790] sm:$0xff]
    %v345 = vld [vmem:[#allocation5 + $0x798] sm:$0xff]
    %v346 = vld [vmem:[#allocation5 + $0x7a0] sm:$0xff]
    %v347 = vld [vmem:[#allocation5 + $0x7a8] sm:$0xff]
    %v348 = vld [vmem:[#allocation5 + $0x7b0] sm:$0xff]
    %v349 = vld [vmem:[#allocation5 + $0x7b8] sm:$0xff]
    %v350 = vld [vmem:[#allocation5 + $0x7c0] sm:$0xff]
    %v351 = vld [vmem:[#allocation5 + $0x7c8] sm:$0xff]
    %v352 = vld [vmem:[#allocation5 + $0x7d0] sm:$0xff]
    %v353 = vld [vmem:[#allocation5 + $0x7d8] sm:$0xff]
    %v354 = vld [vmem:[#allocation5 + $0x7e0] sm:$0xff]
    %v355 = vld [vmem:[#allocation5 + $0x7e8] sm:$0xff]
    %v356 = vld [vmem:[#allocation5 + $0x7f0] sm:$0xff]
    %v357 = vld [vmem:[#allocation5 + $0x7f8] sm:$0xff]
    %v358 = vld [vmem:[#allocation7] sm:$0x3]
    %v359 = vsub.f32 %v101, -0.6
    %v360 = vmax.f32 %v359, 0.0
    %v361 = vsub.f32 0.2, %v101
    %v362 = vmax.f32 %v361, 0.0
    %v363 = vmul.f32 %v360, %v362
    %v364 = vmul.f32 %v363, %v363
    %v365 = vmul.f32 %v364, 39.0625
    %v366 = vsub.f32 %v101, -0.4
    %v367 = vmax.f32 %v366, 0.0
    %v368 = vsub.f32 0.4, %v101
    %v369 = vmax.f32 %v368, 0.0
    %v370 = vmul.f32 %v367, %v369
    %v371 = vmul.f32 %v370, %v370
    %v372 = vmul.f32 %v371, 39.0625
    %v373 = vsub.f32 %v101, -0.2
    %v374 = vmax.f32 %v373, 0.0
    %v375 = vsub.f32 0.6, %v101
    %v376 = vmax.f32 %v375, 0.0
    %v377 = vmul.f32 %v374, %v376
    %v378 = vmul.f32 %v377, %v377
    %v379 = vmul.f32 %v378, 39.0625
    %v380 = vmax.f32 %v101, 0.0
    %v381 = vsub.f32 0.8, %v101
    %v382 = vmax.f32 %v381, 0.0
    %v383 = vmul.f32 %v380, %v382
    %v384 = vmul.f32 %v383, %v383
    %v385 = vmul.f32 %v384, 39.0625
    %v386 = vsub.f32 %v101, 0.2
    %v387 = vmax.f32 %v386, 0.0
    %v388 = vsub.f32 1.0, %v101
    %v389 = vmax.f32 %v388, 0.0
    %v390 = vmul.f32 %v387, %v389
    %v391 = vmul.f32 %v390, %v390
    %v392 = vmul.f32 %v391, 39.0625
    %v393 = vsub.f32 %v101, 0.4
    %v394 = vmax.f32 %v393, 0.0
    %v395 = vsub.f32 1.2, %v101
    %v396 = vmax.f32 %v395, 0.0
    %v397 = vmul.f32 %v394, %v396
    %v398 = vmul.f32 %v397, %v397
    %v399 = vmul.f32 %v398, 39.0625
    %v400 = vsub.f32 %v101, 0.6
    %v401 = vmax.f32 %v400, 0.0
    %v402 = vsub.f32 1.4, %v101
    %v403 = vmax.f32 %v402, 0.0
    %v404 = vmul.f32 %v401, %v403
    %v405 = vmul.f32 %v404, %v404
    %v406 = vmul.f32 %v405, 39.0625
    %v407 = vsub.f32 %v101, 0.8
    %v408 = vmax.f32 %v407, 0.0
    %v409 = vsub.f32 1.6, %v101
    %v410 = vmax.f32 %v409, 0.0
    %v411 = vmul.f32 %v408, %v410
    %v412 = vmul.f32 %v411, %v411
    %v413 = vmul.f32 %v412, 39.0625
    %v415 = vperm.slane %v358, 0
    %v416 = vperm.slane %v358, 1
    %419 = vmatpush.msra.mxu0 %v132
    %420 = vmatpush.msra.mxu0 %v130
    %421 = vmatpush.msra.mxu0 %v128
    %422 = vmatpush.msra.mxu0 %v126
    %423 = vmatpush.msra.mxu0 %v124
    %424 = vmatpush.msra.mxu0 %v122
    %425 = vmatpush.msra.mxu0 %v120
    %426 = vmatpush.msra.mxu0 %v118
    %427 = vmatpush.msra.mxu0 %v116
    %428 = vmatpush.msra.mxu0 %v114
    %429 = vmatpush.msra.mxu0 %v112
    %430 = vmatpush.msra.mxu0 %v110
    %431 = vmatpush.msra.mxu0 %v108
    %432 = vmatpush.msra.mxu0 %v106
    %433 = vmatpush.msra.mxu0 %v104
    %434 = vmatpush.msra.mxu0 %v102
    %435 = vmatmul.f32.gmra.mxu0 %v365
    %v436 = vpop.f32.mrf.mxu0
    %v437 = vadd.f32 %v415, %v436
    %438 = vdwg.mxu0
    %439 = vmatpush.msra.mxu0 %v164
    %440 = vmatpush.msra.mxu0 %v162
    %441 = vmatpush.msra.mxu0 %v160
    %442 = vmatpush.msra.mxu0 %v158
    %443 = vmatpush.msra.mxu0 %v156
    %444 = vmatpush.msra.mxu0 %v154
    %445 = vmatpush.msra.mxu0 %v152
    %446 = vmatpush.msra.mxu0 %v150
    %447 = vmatpush.msra.mxu0 %v148
    %448 = vmatpush.msra.mxu0 %v146
    %449 = vmatpush.msra.mxu0 %v144
    %450 = vmatpush.msra.mxu0 %v142
    %451 = vmatpush.msra.mxu0 %v140
    %452 = vmatpush.msra.mxu0 %v138
    %453 = vmatpush.msra.mxu0 %v136
    %454 = vmatpush.msra.mxu0 %v134
    %455 = vmatmul.f32.gmra.mxu0 %v372
    %v456 = vpop.f32.mrf.mxu0
    %v457 = vadd.f32 %v437, %v456
    %458 = vdwg.mxu0
    %459 = vmatpush.msra.mxu0 %v196
    %460 = vmatpush.msra.mxu0 %v194
    %461 = vmatpush.msra.mxu0 %v192
    %462 = vmatpush.msra.mxu0 %v190
    %463 = vmatpush.msra.mxu0 %v188
    %464 = vmatpush.msra.mxu0 %v186
    %465 = vmatpush.msra.mxu0 %v184
    %466 = vmatpush.msra.mxu0 %v182
    %467 = vmatpush.msra.mxu0 %v180
    %468 = vmatpush.msra.mxu0 %v178
    %469 = vmatpush.msra.mxu0 %v176
    %470 = vmatpush.msra.mxu0 %v174
    %471 = vmatpush.msra.mxu0 %v172
    %472 = vmatpush.msra.mxu0 %v170
    %473 = vmatpush.msra.mxu0 %v168
    %474 = vmatpush.msra.mxu0 %v166
    %475 = vmatmul.f32.gmra.mxu0 %v379
    %v476 = vpop.f32.mrf.mxu0
    %v477 = vadd.f32 %v457, %v476
    %478 = vdwg.mxu0
    %479 = vmatpush.msra.mxu0 %v228
    %480 = vmatpush.msra.mxu0 %v226
    %481 = vmatpush.msra.mxu0 %v224
    %482 = vmatpush.msra.mxu0 %v222
    %483 = vmatpush.msra.mxu0 %v220
    %484 = vmatpush.msra.mxu0 %v218
    %485 = vmatpush.msra.mxu0 %v216
    %486 = vmatpush.msra.mxu0 %v214
    %487 = vmatpush.msra.mxu0 %v212
    %488 = vmatpush.msra.mxu0 %v210
    %489 = vmatpush.msra.mxu0 %v208
    %490 = vmatpush.msra.mxu0 %v206
    %491 = vmatpush.msra.mxu0 %v204
    %492 = vmatpush.msra.mxu0 %v202
    %493 = vmatpush.msra.mxu0 %v200
    %494 = vmatpush.msra.mxu0 %v198
    %495 = vmatmul.f32.gmra.mxu0 %v385
    %v496 = vpop.f32.mrf.mxu0
    %v497 = vadd.f32 %v477, %v496
    %498 = vdwg.mxu0
    %499 = vmatpush.msra.mxu0 %v260
    %500 = vmatpush.msra.mxu0 %v258
    %501 = vmatpush.msra.mxu0 %v256
    %502 = vmatpush.msra.mxu0 %v254
    %503 = vmatpush.msra.mxu0 %v252
    %504 = vmatpush.msra.mxu0 %v250
    %505 = vmatpush.msra.mxu0 %v248
    %506 = vmatpush.msra.mxu0 %v246
    %507 = vmatpush.msra.mxu0 %v244
    %508 = vmatpush.msra.mxu0 %v242
    %509 = vmatpush.msra.mxu0 %v240
    %510 = vmatpush.msra.mxu0 %v238
    %511 = vmatpush.msra.mxu0 %v236
    %512 = vmatpush.msra.mxu0 %v234
    %513 = vmatpush.msra.mxu0 %v232
    %514 = vmatpush.msra.mxu0 %v230
    %515 = vmatmul.f32.gmra.mxu0 %v392
    %v516 = vpop.f32.mrf.mxu0
    %v517 = vadd.f32 %v497, %v516
    %518 = vdwg.mxu0
    %519 = vmatpush.msra.mxu0 %v292
    %520 = vmatpush.msra.mxu0 %v290
    %521 = vmatpush.msra.mxu0 %v288
    %522 = vmatpush.msra.mxu0 %v286
    %523 = vmatpush.msra.mxu0 %v284
    %524 = vmatpush.msra.mxu0 %v282
    %525 = vmatpush.msra.mxu0 %v280
    %526 = vmatpush.msra.mxu0 %v278
    %527 = vmatpush.msra.mxu0 %v276
    %528 = vmatpush.msra.mxu0 %v274
    %529 = vmatpush.msra.mxu0 %v272
    %530 = vmatpush.msra.mxu0 %v270
    %531 = vmatpush.msra.mxu0 %v268
    %532 = vmatpush.msra.mxu0 %v266
    %533 = vmatpush.msra.mxu0 %v264
    %534 = vmatpush.msra.mxu0 %v262
    %535 = vmatmul.f32.gmra.mxu0 %v399
    %v536 = vpop.f32.mrf.mxu0
    %v537 = vadd.f32 %v517, %v536
    %538 = vdwg.mxu0
    %539 = vmatpush.msra.mxu0 %v324
    %540 = vmatpush.msra.mxu0 %v322
    %541 = vmatpush.msra.mxu0 %v320
    %542 = vmatpush.msra.mxu0 %v318
    %543 = vmatpush.msra.mxu0 %v316
    %544 = vmatpush.msra.mxu0 %v314
    %545 = vmatpush.msra.mxu0 %v312
    %546 = vmatpush.msra.mxu0 %v310
    %547 = vmatpush.msra.mxu0 %v308
    %548 = vmatpush.msra.mxu0 %v306
    %549 = vmatpush.msra.mxu0 %v304
    %550 = vmatpush.msra.mxu0 %v302
    %551 = vmatpush.msra.mxu0 %v300
    %552 = vmatpush.msra.mxu0 %v298
    %553 = vmatpush.msra.mxu0 %v296
    %554 = vmatpush.msra.mxu0 %v294
    %555 = vmatmul.f32.gmra.mxu0 %v406
    %v556 = vpop.f32.mrf.mxu0
    %v557 = vadd.f32 %v537, %v556
    %558 = vdwg.mxu0
    %559 = vmatpush.msra.mxu0 %v356
    %560 = vmatpush.msra.mxu0 %v354
    %561 = vmatpush.msra.mxu0 %v352
    %562 = vmatpush.msra.mxu0 %v350
    %563 = vmatpush.msra.mxu0 %v348
    %564 = vmatpush.msra.mxu0 %v346
    %565 = vmatpush.msra.mxu0 %v344
    %566 = vmatpush.msra.mxu0 %v342
    %567 = vmatpush.msra.mxu0 %v340
    %568 = vmatpush.msra.mxu0 %v338
    %569 = vmatpush.msra.mxu0 %v336
    %570 = vmatpush.msra.mxu0 %v334
    %571 = vmatpush.msra.mxu0 %v332
    %572 = vmatpush.msra.mxu0 %v330
    %573 = vmatpush.msra.mxu0 %v328
    %574 = vmatpush.msra.mxu0 %v326
    %575 = vmatmul.f32.gmra.mxu0 %v413
    %v576 = vpop.f32.mrf.mxu0
    %v577 = vadd.f32 %v557, %v576
    %578 = vdwg.mxu0
    %579 = vmatpush.msra.mxu0 %v133
    %580 = vmatpush.msra.mxu0 %v131
    %581 = vmatpush.msra.mxu0 %v129
    %582 = vmatpush.msra.mxu0 %v127
    %583 = vmatpush.msra.mxu0 %v125
    %584 = vmatpush.msra.mxu0 %v123
    %585 = vmatpush.msra.mxu0 %v121
    %586 = vmatpush.msra.mxu0 %v119
    %587 = vmatpush.msra.mxu0 %v117
    %588 = vmatpush.msra.mxu0 %v115
    %589 = vmatpush.msra.mxu0 %v113
    %590 = vmatpush.msra.mxu0 %v111
    %591 = vmatpush.msra.mxu0 %v109
    %592 = vmatpush.msra.mxu0 %v107
    %593 = vmatpush.msra.mxu0 %v105
    %594 = vmatpush.msra.mxu0 %v103
    %595 = vmatmul.f32.gmra.mxu0 %v365
    %v596 = vpop.f32.mrf.mxu0
    %v597 = vadd.f32 %v416, %v596
    %598 = vdwg.mxu0
    %599 = vmatpush.msra.mxu0 %v165
    %600 = vmatpush.msra.mxu0 %v163
    %601 = vmatpush.msra.mxu0 %v161
    %602 = vmatpush.msra.mxu0 %v159
    %603 = vmatpush.msra.mxu0 %v157
    %604 = vmatpush.msra.mxu0 %v155
    %605 = vmatpush.msra.mxu0 %v153
    %606 = vmatpush.msra.mxu0 %v151
    %607 = vmatpush.msra.mxu0 %v149
    %608 = vmatpush.msra.mxu0 %v147
    %609 = vmatpush.msra.mxu0 %v145
    %610 = vmatpush.msra.mxu0 %v143
    %611 = vmatpush.msra.mxu0 %v141
    %612 = vmatpush.msra.mxu0 %v139
    %613 = vmatpush.msra.mxu0 %v137
    %614 = vmatpush.msra.mxu0 %v135
    %615 = vmatmul.f32.gmra.mxu0 %v372
    %v616 = vpop.f32.mrf.mxu0
    %v617 = vadd.f32 %v597, %v616
    %618 = vdwg.mxu0
    %619 = vmatpush.msra.mxu0 %v197
    %620 = vmatpush.msra.mxu0 %v195
    %621 = vmatpush.msra.mxu0 %v193
    %622 = vmatpush.msra.mxu0 %v191
    %623 = vmatpush.msra.mxu0 %v189
    %624 = vmatpush.msra.mxu0 %v187
    %625 = vmatpush.msra.mxu0 %v185
    %626 = vmatpush.msra.mxu0 %v183
    %627 = vmatpush.msra.mxu0 %v181
    %628 = vmatpush.msra.mxu0 %v179
    %629 = vmatpush.msra.mxu0 %v177
    %630 = vmatpush.msra.mxu0 %v175
    %631 = vmatpush.msra.mxu0 %v173
    %632 = vmatpush.msra.mxu0 %v171
    %633 = vmatpush.msra.mxu0 %v169
    %634 = vmatpush.msra.mxu0 %v167
    %635 = vmatmul.f32.gmra.mxu0 %v379
    %v636 = vpop.f32.mrf.mxu0
    %v637 = vadd.f32 %v617, %v636
    %638 = vdwg.mxu0
    %639 = vmatpush.msra.mxu0 %v229
    %640 = vmatpush.msra.mxu0 %v227
    %641 = vmatpush.msra.mxu0 %v225
    %642 = vmatpush.msra.mxu0 %v223
    %643 = vmatpush.msra.mxu0 %v221
    %644 = vmatpush.msra.mxu0 %v219
    %645 = vmatpush.msra.mxu0 %v217
    %646 = vmatpush.msra.mxu0 %v215
    %647 = vmatpush.msra.mxu0 %v213
    %648 = vmatpush.msra.mxu0 %v211
    %649 = vmatpush.msra.mxu0 %v209
    %650 = vmatpush.msra.mxu0 %v207
    %651 = vmatpush.msra.mxu0 %v205
    %652 = vmatpush.msra.mxu0 %v203
    %653 = vmatpush.msra.mxu0 %v201
    %654 = vmatpush.msra.mxu0 %v199
    %655 = vmatmul.f32.gmra.mxu0 %v385
    %v656 = vpop.f32.mrf.mxu0
    %v657 = vadd.f32 %v637, %v656
    %658 = vdwg.mxu0
    %659 = vmatpush.msra.mxu0 %v261
    %660 = vmatpush.msra.mxu0 %v259
    %661 = vmatpush.msra.mxu0 %v257
    %662 = vmatpush.msra.mxu0 %v255
    %663 = vmatpush.msra.mxu0 %v253
    %664 = vmatpush.msra.mxu0 %v251
    %665 = vmatpush.msra.mxu0 %v249
    %666 = vmatpush.msra.mxu0 %v247
    %667 = vmatpush.msra.mxu0 %v245
    %668 = vmatpush.msra.mxu0 %v243
    %669 = vmatpush.msra.mxu0 %v241
    %670 = vmatpush.msra.mxu0 %v239
    %671 = vmatpush.msra.mxu0 %v237
    %672 = vmatpush.msra.mxu0 %v235
    %673 = vmatpush.msra.mxu0 %v233
    %674 = vmatpush.msra.mxu0 %v231
    %675 = vmatmul.f32.gmra.mxu0 %v392
    %v676 = vpop.f32.mrf.mxu0
    %v677 = vadd.f32 %v657, %v676
    %678 = vdwg.mxu0
    %679 = vmatpush.msra.mxu0 %v293
    %680 = vmatpush.msra.mxu0 %v291
    %681 = vmatpush.msra.mxu0 %v289
    %682 = vmatpush.msra.mxu0 %v287
    %683 = vmatpush.msra.mxu0 %v285
    %684 = vmatpush.msra.mxu0 %v283
    %685 = vmatpush.msra.mxu0 %v281
    %686 = vmatpush.msra.mxu0 %v279
    %687 = vmatpush.msra.mxu0 %v277
    %688 = vmatpush.msra.mxu0 %v275
    %689 = vmatpush.msra.mxu0 %v273
    %690 = vmatpush.msra.mxu0 %v271
    %691 = vmatpush.msra.mxu0 %v269
    %692 = vmatpush.msra.mxu0 %v267
    %693 = vmatpush.msra.mxu0 %v265
    %694 = vmatpush.msra.mxu0 %v263
    %695 = vmatmul.f32.gmra.mxu0 %v399
    %v696 = vpop.f32.mrf.mxu0
    %v697 = vadd.f32 %v677, %v696
    %698 = vdwg.mxu0
    %699 = vmatpush.msra.mxu0 %v325
    %700 = vmatpush.msra.mxu0 %v323
    %701 = vmatpush.msra.mxu0 %v321
    %702 = vmatpush.msra.mxu0 %v319
    %703 = vmatpush.msra.mxu0 %v317
    %704 = vmatpush.msra.mxu0 %v315
    %705 = vmatpush.msra.mxu0 %v313
    %706 = vmatpush.msra.mxu0 %v311
    %707 = vmatpush.msra.mxu0 %v309
    %708 = vmatpush.msra.mxu0 %v307
    %709 = vmatpush.msra.mxu0 %v305
    %710 = vmatpush.msra.mxu0 %v303
    %711 = vmatpush.msra.mxu0 %v301
    %712 = vmatpush.msra.mxu0 %v299
    %713 = vmatpush.msra.mxu0 %v297
    %714 = vmatpush.msra.mxu0 %v295
    %715 = vmatmul.f32.gmra.mxu0 %v406
    %v716 = vpop.f32.mrf.mxu0
    %v717 = vadd.f32 %v697, %v716
    %718 = vdwg.mxu0
    %719 = vmatpush.msra.mxu0 %v357
    %720 = vmatpush.msra.mxu0 %v355
    %721 = vmatpush.msra.mxu0 %v353
    %722 = vmatpush.msra.mxu0 %v351
    %723 = vmatpush.msra.mxu0 %v349
    %724 = vmatpush.msra.mxu0 %v347
    %725 = vmatpush.msra.mxu0 %v345
    %726 = vmatpush.msra.mxu0 %v343
    %727 = vmatpush.msra.mxu0 %v341
    %728 = vmatpush.msra.mxu0 %v339
    %729 = vmatpush.msra.mxu0 %v337
    %730 = vmatpush.msra.mxu0 %v335
    %731 = vmatpush.msra.mxu0 %v333
    %732 = vmatpush.msra.mxu0 %v331
    %733 = vmatpush.msra.mxu0 %v329
    %734 = vmatpush.msra.mxu0 %v327
    %735 = vmatmul.f32.gmra.mxu0 %v413
    %v736 = vpop.f32.mrf.mxu0
    %v737 = vadd.f32 %v717, %v736
    %738 = vdwg.mxu0
    %v739 = vadd.f32 %v737, 0.0
    %v740 = vld [vmem:[#allocation8] sm:$0xff]
    %v741 = vld [vmem:[#allocation8 + $0x8] sm:$0xff]
    %v742 = vld [vmem:[#allocation8 + $0x10] sm:$0xff]
    %v743 = vld [vmem:[#allocation8 + $0x18] sm:$0xff]
    %v744 = vld [vmem:[#allocation8 + $0x20] sm:$0xff]
    %v745 = vld [vmem:[#allocation8 + $0x28] sm:$0xff]
    %v746 = vld [vmem:[#allocation8 + $0x30] sm:$0xff]
    %v747 = vld [vmem:[#allocation8 + $0x38] sm:$0xff]
    %v748 = vld [vmem:[#allocation8 + $0x40] sm:$0xff]
    %v749 = vld [vmem:[#allocation8 + $0x48] sm:$0xff]
    %v750 = vld [vmem:[#allocation8 + $0x50] sm:$0xff]
    %v751 = vld [vmem:[#allocation8 + $0x58] sm:$0xff]
    %v752 = vld [vmem:[#allocation8 + $0x60] sm:$0xff]
    %v753 = vld [vmem:[#allocation8 + $0x68] sm:$0xff]
    %v754 = vld [vmem:[#allocation8 + $0x70] sm:$0xff]
    %v755 = vld [vmem:[#allocation8 + $0x78] sm:$0xff]
    %v756 = vld [vmem:[#allocation8 + $0x80] sm:$0xff]
    %v757 = vld [vmem:[#allocation8 + $0x88] sm:$0xff]
    %v758 = vld [vmem:[#allocation8 + $0x90] sm:$0xff]
    %v759 = vld [vmem:[#allocation8 + $0x98] sm:$0xff]
    %v760 = vld [vmem:[#allocation8 + $0xa0] sm:$0xff]
    %v761 = vld [vmem:[#allocation8 + $0xa8] sm:$0xff]
    %v762 = vld [vmem:[#allocation8 + $0xb0] sm:$0xff]
    %v763 = vld [vmem:[#allocation8 + $0xb8] sm:$0xff]
    %v764 = vld [vmem:[#allocation8 + $0xc0] sm:$0xff]
    %v765 = vld [vmem:[#allocation8 + $0xc8] sm:$0xff]
    %v766 = vld [vmem:[#allocation8 + $0xd0] sm:$0xff]
    %v767 = vld [vmem:[#allocation8 + $0xd8] sm:$0xff]
    %v768 = vld [vmem:[#allocation8 + $0xe0] sm:$0xff]
    %v769 = vld [vmem:[#allocation8 + $0xe8] sm:$0xff]
    %v770 = vld [vmem:[#allocation8 + $0xf0] sm:$0xff]
    %v771 = vld [vmem:[#allocation8 + $0xf8] sm:$0xff]
    %v772 = vld [vmem:[#allocation8 + $0x100] sm:$0xff]
    %v773 = vld [vmem:[#allocation8 + $0x108] sm:$0xff]
    %v774 = vld [vmem:[#allocation8 + $0x110] sm:$0xff]
    %v775 = vld [vmem:[#allocation8 + $0x118] sm:$0xff]
    %v776 = vld [vmem:[#allocation8 + $0x120] sm:$0xff]
    %v777 = vld [vmem:[#allocation8 + $0x128] sm:$0xff]
    %v778 = vld [vmem:[#allocation8 + $0x130] sm:$0xff]
    %v779 = vld [vmem:[#allocation8 + $0x138] sm:$0xff]
    %v780 = vld [vmem:[#allocation8 + $0x140] sm:$0xff]
    %v781 = vld [vmem:[#allocation8 + $0x148] sm:$0xff]
    %v782 = vld [vmem:[#allocation8 + $0x150] sm:$0xff]
    %v783 = vld [vmem:[#allocation8 + $0x158] sm:$0xff]
    %v784 = vld [vmem:[#allocation8 + $0x160] sm:$0xff]
    %v785 = vld [vmem:[#allocation8 + $0x168] sm:$0xff]
    %v786 = vld [vmem:[#allocation8 + $0x170] sm:$0xff]
    %v787 = vld [vmem:[#allocation8 + $0x178] sm:$0xff]
    %v788 = vld [vmem:[#allocation8 + $0x180] sm:$0xff]
    %v789 = vld [vmem:[#allocation8 + $0x188] sm:$0xff]
    %v790 = vld [vmem:[#allocation8 + $0x190] sm:$0xff]
    %v791 = vld [vmem:[#allocation8 + $0x198] sm:$0xff]
    %v792 = vld [vmem:[#allocation8 + $0x1a0] sm:$0xff]
    %v793 = vld [vmem:[#allocation8 + $0x1a8] sm:$0xff]
    %v794 = vld [vmem:[#allocation8 + $0x1b0] sm:$0xff]
    %v795 = vld [vmem:[#allocation8 + $0x1b8] sm:$0xff]
    %v796 = vld [vmem:[#allocation8 + $0x1c0] sm:$0xff]
    %v797 = vld [vmem:[#allocation8 + $0x1c8] sm:$0xff]
    %v798 = vld [vmem:[#allocation8 + $0x1d0] sm:$0xff]
    %v799 = vld [vmem:[#allocation8 + $0x1d8] sm:$0xff]
    %v800 = vld [vmem:[#allocation8 + $0x1e0] sm:$0xff]
    %v801 = vld [vmem:[#allocation8 + $0x1e8] sm:$0xff]
    %v802 = vld [vmem:[#allocation8 + $0x1f0] sm:$0xff]
    %v803 = vld [vmem:[#allocation8 + $0x1f8] sm:$0xff]
    %v804 = vld [vmem:[#allocation8 + $0x200] sm:$0xff]
    %v805 = vld [vmem:[#allocation8 + $0x208] sm:$0xff]
    %v806 = vld [vmem:[#allocation8 + $0x210] sm:$0xff]
    %v807 = vld [vmem:[#allocation8 + $0x218] sm:$0xff]
    %v808 = vld [vmem:[#allocation8 + $0x220] sm:$0xff]
    %v809 = vld [vmem:[#allocation8 + $0x228] sm:$0xff]
    %v810 = vld [vmem:[#allocation8 + $0x230] sm:$0xff]
    %v811 = vld [vmem:[#allocation8 + $0x238] sm:$0xff]
    %v812 = vld [vmem:[#allocation8 + $0x240] sm:$0xff]
    %v813 = vld [vmem:[#allocation8 + $0x248] sm:$0xff]
    %v814 = vld [vmem:[#allocation8 + $0x250] sm:$0xff]
    %v815 = vld [vmem:[#allocation8 + $0x258] sm:$0xff]
    %v816 = vld [vmem:[#allocation8 + $0x260] sm:$0xff]
    %v817 = vld [vmem:[#allocation8 + $0x268] sm:$0xff]
    %v818 = vld [vmem:[#allocation8 + $0x270] sm:$0xff]
    %v819 = vld [vmem:[#allocation8 + $0x278] sm:$0xff]
    %v820 = vld [vmem:[#allocation8 + $0x280] sm:$0xff]
    %v821 = vld [vmem:[#allocation8 + $0x288] sm:$0xff]
    %v822 = vld [vmem:[#allocation8 + $0x290] sm:$0xff]
    %v823 = vld [vmem:[#allocation8 + $0x298] sm:$0xff]
    %v824 = vld [vmem:[#allocation8 + $0x2a0] sm:$0xff]
    %v825 = vld [vmem:[#allocation8 + $0x2a8] sm:$0xff]
    %v826 = vld [vmem:[#allocation8 + $0x2b0] sm:$0xff]
    %v827 = vld [vmem:[#allocation8 + $0x2b8] sm:$0xff]
    %v828 = vld [vmem:[#allocation8 + $0x2c0] sm:$0xff]
    %v829 = vld [vmem:[#allocation8 + $0x2c8] sm:$0xff]
    %v830 = vld [vmem:[#allocation8 + $0x2d0] sm:$0xff]
    %v831 = vld [vmem:[#allocation8 + $0x2d8] sm:$0xff]
    %v832 = vld [vmem:[#allocation8 + $0x2e0] sm:$0xff]
    %v833 = vld [vmem:[#allocation8 + $0x2e8] sm:$0xff]
    %v834 = vld [vmem:[#allocation8 + $0x2f0] sm:$0xff]
    %v835 = vld [vmem:[#allocation8 + $0x2f8] sm:$0xff]
    %v836 = vld [vmem:[#allocation8 + $0x300] sm:$0xff]
    %v837 = vld [vmem:[#allocation8 + $0x308] sm:$0xff]
    %v838 = vld [vmem:[#allocation8 + $0x310] sm:$0xff]
    %v839 = vld [vmem:[#allocation8 + $0x318] sm:$0xff]
    %v840 = vld [vmem:[#allocation8 + $0x320] sm:$0xff]
    %v841 = vld [vmem:[#allocation8 + $0x328] sm:$0xff]
    %v842 = vld [vmem:[#allocation8 + $0x330] sm:$0xff]
    %v843 = vld [vmem:[#allocation8 + $0x338] sm:$0xff]
    %v844 = vld [vmem:[#allocation8 + $0x340] sm:$0xff]
    %v845 = vld [vmem:[#allocation8 + $0x348] sm:$0xff]
    %v846 = vld [vmem:[#allocation8 + $0x350] sm:$0xff]
    %v847 = vld [vmem:[#allocation8 + $0x358] sm:$0xff]
    %v848 = vld [vmem:[#allocation8 + $0x360] sm:$0xff]
    %v849 = vld [vmem:[#allocation8 + $0x368] sm:$0xff]
    %v850 = vld [vmem:[#allocation8 + $0x370] sm:$0xff]
    %v851 = vld [vmem:[#allocation8 + $0x378] sm:$0xff]
    %v852 = vld [vmem:[#allocation8 + $0x380] sm:$0xff]
    %v853 = vld [vmem:[#allocation8 + $0x388] sm:$0xff]
    %v854 = vld [vmem:[#allocation8 + $0x390] sm:$0xff]
    %v855 = vld [vmem:[#allocation8 + $0x398] sm:$0xff]
    %v856 = vld [vmem:[#allocation8 + $0x3a0] sm:$0xff]
    %v857 = vld [vmem:[#allocation8 + $0x3a8] sm:$0xff]
    %v858 = vld [vmem:[#allocation8 + $0x3b0] sm:$0xff]
    %v859 = vld [vmem:[#allocation8 + $0x3b8] sm:$0xff]
    %v860 = vld [vmem:[#allocation8 + $0x3c0] sm:$0xff]
    %v861 = vld [vmem:[#allocation8 + $0x3c8] sm:$0xff]
    %v862 = vld [vmem:[#allocation8 + $0x3d0] sm:$0xff]
    %v863 = vld [vmem:[#allocation8 + $0x3d8] sm:$0xff]
    %v864 = vld [vmem:[#allocation8 + $0x3e0] sm:$0xff]
    %v865 = vld [vmem:[#allocation8 + $0x3e8] sm:$0xff]
    %v866 = vld [vmem:[#allocation8 + $0x3f0] sm:$0xff]
    %v867 = vld [vmem:[#allocation8 + $0x3f8] sm:$0xff]
    %v868 = vld [vmem:[#allocation8 + $0x400] sm:$0xff]
    %v869 = vld [vmem:[#allocation8 + $0x408] sm:$0xff]
    %v870 = vld [vmem:[#allocation8 + $0x410] sm:$0xff]
    %v871 = vld [vmem:[#allocation8 + $0x418] sm:$0xff]
    %v872 = vld [vmem:[#allocation8 + $0x420] sm:$0xff]
    %v873 = vld [vmem:[#allocation8 + $0x428] sm:$0xff]
    %v874 = vld [vmem:[#allocation8 + $0x430] sm:$0xff]
    %v875 = vld [vmem:[#allocation8 + $0x438] sm:$0xff]
    %v876 = vld [vmem:[#allocation8 + $0x440] sm:$0xff]
    %v877 = vld [vmem:[#allocation8 + $0x448] sm:$0xff]
    %v878 = vld [vmem:[#allocation8 + $0x450] sm:$0xff]
    %v879 = vld [vmem:[#allocation8 + $0x458] sm:$0xff]
    %v880 = vld [vmem:[#allocation8 + $0x460] sm:$0xff]
    %v881 = vld [vmem:[#allocation8 + $0x468] sm:$0xff]
    %v882 = vld [vmem:[#allocation8 + $0x470] sm:$0xff]
    %v883 = vld [vmem:[#allocation8 + $0x478] sm:$0xff]
    %v884 = vld [vmem:[#allocation8 + $0x480] sm:$0xff]
    %v885 = vld [vmem:[#allocation8 + $0x488] sm:$0xff]
    %v886 = vld [vmem:[#allocation8 + $0x490] sm:$0xff]
    %v887 = vld [vmem:[#allocation8 + $0x498] sm:$0xff]
    %v888 = vld [vmem:[#allocation8 + $0x4a0] sm:$0xff]
    %v889 = vld [vmem:[#allocation8 + $0x4a8] sm:$0xff]
    %v890 = vld [vmem:[#allocation8 + $0x4b0] sm:$0xff]
    %v891 = vld [vmem:[#allocation8 + $0x4b8] sm:$0xff]
    %v892 = vld [vmem:[#allocation8 + $0x4c0] sm:$0xff]
    %v893 = vld [vmem:[#allocation8 + $0x4c8] sm:$0xff]
    %v894 = vld [vmem:[#allocation8 + $0x4d0] sm:$0xff]
    %v895 = vld [vmem:[#allocation8 + $0x4d8] sm:$0xff]
    %v896 = vld [vmem:[#allocation8 + $0x4e0] sm:$0xff]
    %v897 = vld [vmem:[#allocation8 + $0x4e8] sm:$0xff]
    %v898 = vld [vmem:[#allocation8 + $0x4f0] sm:$0xff]
    %v899 = vld [vmem:[#allocation8 + $0x4f8] sm:$0xff]
    %v900 = vld [vmem:[#allocation8 + $0x500] sm:$0xff]
    %v901 = vld [vmem:[#allocation8 + $0x508] sm:$0xff]
    %v902 = vld [vmem:[#allocation8 + $0x510] sm:$0xff]
    %v903 = vld [vmem:[#allocation8 + $0x518] sm:$0xff]
    %v904 = vld [vmem:[#allocation8 + $0x520] sm:$0xff]
    %v905 = vld [vmem:[#allocation8 + $0x528] sm:$0xff]
    %v906 = vld [vmem:[#allocation8 + $0x530] sm:$0xff]
    %v907 = vld [vmem:[#allocation8 + $0x538] sm:$0xff]
    %v908 = vld [vmem:[#allocation8 + $0x540] sm:$0xff]
    %v909 = vld [vmem:[#allocation8 + $0x548] sm:$0xff]
    %v910 = vld [vmem:[#allocation8 + $0x550] sm:$0xff]
    %v911 = vld [vmem:[#allocation8 + $0x558] sm:$0xff]
    %v912 = vld [vmem:[#allocation8 + $0x560] sm:$0xff]
    %v913 = vld [vmem:[#allocation8 + $0x568] sm:$0xff]
    %v914 = vld [vmem:[#allocation8 + $0x570] sm:$0xff]
    %v915 = vld [vmem:[#allocation8 + $0x578] sm:$0xff]
    %v916 = vld [vmem:[#allocation8 + $0x580] sm:$0xff]
    %v917 = vld [vmem:[#allocation8 + $0x588] sm:$0xff]
    %v918 = vld [vmem:[#allocation8 + $0x590] sm:$0xff]
    %v919 = vld [vmem:[#allocation8 + $0x598] sm:$0xff]
    %v920 = vld [vmem:[#allocation8 + $0x5a0] sm:$0xff]
    %v921 = vld [vmem:[#allocation8 + $0x5a8] sm:$0xff]
    %v922 = vld [vmem:[#allocation8 + $0x5b0] sm:$0xff]
    %v923 = vld [vmem:[#allocation8 + $0x5b8] sm:$0xff]
    %v924 = vld [vmem:[#allocation8 + $0x5c0] sm:$0xff]
    %v925 = vld [vmem:[#allocation8 + $0x5c8] sm:$0xff]
    %v926 = vld [vmem:[#allocation8 + $0x5d0] sm:$0xff]
    %v927 = vld [vmem:[#allocation8 + $0x5d8] sm:$0xff]
    %v928 = vld [vmem:[#allocation8 + $0x5e0] sm:$0xff]
    %v929 = vld [vmem:[#allocation8 + $0x5e8] sm:$0xff]
    %v930 = vld [vmem:[#allocation8 + $0x5f0] sm:$0xff]
    %v931 = vld [vmem:[#allocation8 + $0x5f8] sm:$0xff]
    %v932 = vld [vmem:[#allocation8 + $0x600] sm:$0xff]
    %v933 = vld [vmem:[#allocation8 + $0x608] sm:$0xff]
    %v934 = vld [vmem:[#allocation8 + $0x610] sm:$0xff]
    %v935 = vld [vmem:[#allocation8 + $0x618] sm:$0xff]
    %v936 = vld [vmem:[#allocation8 + $0x620] sm:$0xff]
    %v937 = vld [vmem:[#allocation8 + $0x628] sm:$0xff]
    %v938 = vld [vmem:[#allocation8 + $0x630] sm:$0xff]
    %v939 = vld [vmem:[#allocation8 + $0x638] sm:$0xff]
    %v940 = vld [vmem:[#allocation8 + $0x640] sm:$0xff]
    %v941 = vld [vmem:[#allocation8 + $0x648] sm:$0xff]
    %v942 = vld [vmem:[#allocation8 + $0x650] sm:$0xff]
    %v943 = vld [vmem:[#allocation8 + $0x658] sm:$0xff]
    %v944 = vld [vmem:[#allocation8 + $0x660] sm:$0xff]
    %v945 = vld [vmem:[#allocation8 + $0x668] sm:$0xff]
    %v946 = vld [vmem:[#allocation8 + $0x670] sm:$0xff]
    %v947 = vld [vmem:[#allocation8 + $0x678] sm:$0xff]
    %v948 = vld [vmem:[#allocation8 + $0x680] sm:$0xff]
    %v949 = vld [vmem:[#allocation8 + $0x688] sm:$0xff]
    %v950 = vld [vmem:[#allocation8 + $0x690] sm:$0xff]
    %v951 = vld [vmem:[#allocation8 + $0x698] sm:$0xff]
    %v952 = vld [vmem:[#allocation8 + $0x6a0] sm:$0xff]
    %v953 = vld [vmem:[#allocation8 + $0x6a8] sm:$0xff]
    %v954 = vld [vmem:[#allocation8 + $0x6b0] sm:$0xff]
    %v955 = vld [vmem:[#allocation8 + $0x6b8] sm:$0xff]
    %v956 = vld [vmem:[#allocation8 + $0x6c0] sm:$0xff]
    %v957 = vld [vmem:[#allocation8 + $0x6c8] sm:$0xff]
    %v958 = vld [vmem:[#allocation8 + $0x6d0] sm:$0xff]
    %v959 = vld [vmem:[#allocation8 + $0x6d8] sm:$0xff]
    %v960 = vld [vmem:[#allocation8 + $0x6e0] sm:$0xff]
    %v961 = vld [vmem:[#allocation8 + $0x6e8] sm:$0xff]
    %v962 = vld [vmem:[#allocation8 + $0x6f0] sm:$0xff]
    %v963 = vld [vmem:[#allocation8 + $0x6f8] sm:$0xff]
    %v964 = vld [vmem:[#allocation8 + $0x700] sm:$0xff]
    %v965 = vld [vmem:[#allocation8 + $0x708] sm:$0xff]
    %v966 = vld [vmem:[#allocation8 + $0x710] sm:$0xff]
    %v967 = vld [vmem:[#allocation8 + $0x718] sm:$0xff]
    %v968 = vld [vmem:[#allocation8 + $0x720] sm:$0xff]
    %v969 = vld [vmem:[#allocation8 + $0x728] sm:$0xff]
    %v970 = vld [vmem:[#allocation8 + $0x730] sm:$0xff]
    %v971 = vld [vmem:[#allocation8 + $0x738] sm:$0xff]
    %v972 = vld [vmem:[#allocation8 + $0x740] sm:$0xff]
    %v973 = vld [vmem:[#allocation8 + $0x748] sm:$0xff]
    %v974 = vld [vmem:[#allocation8 + $0x750] sm:$0xff]
    %v975 = vld [vmem:[#allocation8 + $0x758] sm:$0xff]
    %v976 = vld [vmem:[#allocation8 + $0x760] sm:$0xff]
    %v977 = vld [vmem:[#allocation8 + $0x768] sm:$0xff]
    %v978 = vld [vmem:[#allocation8 + $0x770] sm:$0xff]
    %v979 = vld [vmem:[#allocation8 + $0x778] sm:$0xff]
    %v980 = vld [vmem:[#allocation8 + $0x780] sm:$0xff]
    %v981 = vld [vmem:[#allocation8 + $0x788] sm:$0xff]
    %v982 = vld [vmem:[#allocation8 + $0x790] sm:$0xff]
    %v983 = vld [vmem:[#allocation8 + $0x798] sm:$0xff]
    %v984 = vld [vmem:[#allocation8 + $0x7a0] sm:$0xff]
    %v985 = vld [vmem:[#allocation8 + $0x7a8] sm:$0xff]
    %v986 = vld [vmem:[#allocation8 + $0x7b0] sm:$0xff]
    %v987 = vld [vmem:[#allocation8 + $0x7b8] sm:$0xff]
    %v988 = vld [vmem:[#allocation8 + $0x7c0] sm:$0xff]
    %v989 = vld [vmem:[#allocation8 + $0x7c8] sm:$0xff]
    %v990 = vld [vmem:[#allocation8 + $0x7d0] sm:$0xff]
    %v991 = vld [vmem:[#allocation8 + $0x7d8] sm:$0xff]
    %v992 = vld [vmem:[#allocation8 + $0x7e0] sm:$0xff]
    %v993 = vld [vmem:[#allocation8 + $0x7e8] sm:$0xff]
    %v994 = vld [vmem:[#allocation8 + $0x7f0] sm:$0xff]
    %v995 = vld [vmem:[#allocation8 + $0x7f8] sm:$0xff]
    %v996 = vld [vmem:[%s4] sm:$0x3]
    %v997 = vsub.f32 %v577, -0.6
    %v998 = vmax.f32 %v997, 0.0
    %v999 = vsub.f32 0.2, %v577
    %v1000 = vmax.f32 %v999, 0.0
    %v1001 = vmul.f32 %v998, %v1000
    %v1002 = vmul.f32 %v1001, %v1001
    %v1003 = vmul.f32 %v1002, 39.0625
    %v1004 = vsub.f32 %v577, -0.4
    %v1005 = vmax.f32 %v1004, 0.0
    %v1006 = vsub.f32 0.4, %v577
    %v1007 = vmax.f32 %v1006, 0.0
    %v1008 = vmul.f32 %v1005, %v1007
    %v1009 = vmul.f32 %v1008, %v1008
    %v1010 = vmul.f32 %v1009, 39.0625
    %v1011 = vsub.f32 %v577, -0.2
    %v1012 = vmax.f32 %v1011, 0.0
    %v1013 = vsub.f32 0.6, %v577
    %v1014 = vmax.f32 %v1013, 0.0
    %v1015 = vmul.f32 %v1012, %v1014
    %v1016 = vmul.f32 %v1015, %v1015
    %v1017 = vmul.f32 %v1016, 39.0625
    %v1018 = vmax.f32 %v577, 0.0
    %v1019 = vsub.f32 0.8, %v577
    %v1020 = vmax.f32 %v1019, 0.0
    %v1021 = vmul.f32 %v1018, %v1020
    %v1022 = vmul.f32 %v1021, %v1021
    %v1023 = vmul.f32 %v1022, 39.0625
    %v1024 = vsub.f32 %v577, 0.2
    %v1025 = vmax.f32 %v1024, 0.0
    %v1026 = vsub.f32 1.0, %v577
    %v1027 = vmax.f32 %v1026, 0.0
    %v1028 = vmul.f32 %v1025, %v1027
    %v1029 = vmul.f32 %v1028, %v1028
    %v1030 = vmul.f32 %v1029, 39.0625
    %v1031 = vsub.f32 %v577, 0.4
    %v1032 = vmax.f32 %v1031, 0.0
    %v1033 = vsub.f32 1.2, %v577
    %v1034 = vmax.f32 %v1033, 0.0
    %v1035 = vmul.f32 %v1032, %v1034
    %v1036 = vmul.f32 %v1035, %v1035
    %v1037 = vmul.f32 %v1036, 39.0625
    %v1038 = vsub.f32 %v577, 0.6
    %v1039 = vmax.f32 %v1038, 0.0
    %v1040 = vsub.f32 1.4, %v577
    %v1041 = vmax.f32 %v1040, 0.0
    %v1042 = vmul.f32 %v1039, %v1041
    %v1043 = vmul.f32 %v1042, %v1042
    %v1044 = vmul.f32 %v1043, 39.0625
    %v1045 = vsub.f32 %v577, 0.8
    %v1046 = vmax.f32 %v1045, 0.0
    %v1047 = vsub.f32 1.6, %v577
    %v1048 = vmax.f32 %v1047, 0.0
    %v1049 = vmul.f32 %v1046, %v1048
    %v1050 = vmul.f32 %v1049, %v1049
    %v1051 = vmul.f32 %v1050, 39.0625
    %v1053 = vperm.slane %v996, 0
    %v1054 = vperm.slane %v996, 1
    %1057 = vmatpush.msra.mxu0 %v770
    %1058 = vmatpush.msra.mxu0 %v768
    %1059 = vmatpush.msra.mxu0 %v766
    %1060 = vmatpush.msra.mxu0 %v764
    %1061 = vmatpush.msra.mxu0 %v762
    %1062 = vmatpush.msra.mxu0 %v760
    %1063 = vmatpush.msra.mxu0 %v758
    %1064 = vmatpush.msra.mxu0 %v756
    %1065 = vmatpush.msra.mxu0 %v754
    %1066 = vmatpush.msra.mxu0 %v752
    %1067 = vmatpush.msra.mxu0 %v750
    %1068 = vmatpush.msra.mxu0 %v748
    %1069 = vmatpush.msra.mxu0 %v746
    %1070 = vmatpush.msra.mxu0 %v744
    %1071 = vmatpush.msra.mxu0 %v742
    %1072 = vmatpush.msra.mxu0 %v740
    %1073 = vmatmul.f32.gmra.mxu0 %v1003
    %v1074 = vpop.f32.mrf.mxu0
    %v1075 = vadd.f32 %v1053, %v1074
    %1076 = vdwg.mxu0
    %1077 = vmatpush.msra.mxu0 %v802
    %1078 = vmatpush.msra.mxu0 %v800
    %1079 = vmatpush.msra.mxu0 %v798
    %1080 = vmatpush.msra.mxu0 %v796
    %1081 = vmatpush.msra.mxu0 %v794
    %1082 = vmatpush.msra.mxu0 %v792
    %1083 = vmatpush.msra.mxu0 %v790
    %1084 = vmatpush.msra.mxu0 %v788
    %1085 = vmatpush.msra.mxu0 %v786
    %1086 = vmatpush.msra.mxu0 %v784
    %1087 = vmatpush.msra.mxu0 %v782
    %1088 = vmatpush.msra.mxu0 %v780
    %1089 = vmatpush.msra.mxu0 %v778
    %1090 = vmatpush.msra.mxu0 %v776
    %1091 = vmatpush.msra.mxu0 %v774
    %1092 = vmatpush.msra.mxu0 %v772
    %1093 = vmatmul.f32.gmra.mxu0 %v1010
    %v1094 = vpop.f32.mrf.mxu0
    %v1095 = vadd.f32 %v1075, %v1094
    %1096 = vdwg.mxu0
    %1097 = vmatpush.msra.mxu0 %v834
    %1098 = vmatpush.msra.mxu0 %v832
    %1099 = vmatpush.msra.mxu0 %v830
    %1100 = vmatpush.msra.mxu0 %v828
    %1101 = vmatpush.msra.mxu0 %v826
    %1102 = vmatpush.msra.mxu0 %v824
    %1103 = vmatpush.msra.mxu0 %v822
    %1104 = vmatpush.msra.mxu0 %v820
    %1105 = vmatpush.msra.mxu0 %v818
    %1106 = vmatpush.msra.mxu0 %v816
    %1107 = vmatpush.msra.mxu0 %v814
    %1108 = vmatpush.msra.mxu0 %v812
    %1109 = vmatpush.msra.mxu0 %v810
    %1110 = vmatpush.msra.mxu0 %v808
    %1111 = vmatpush.msra.mxu0 %v806
    %1112 = vmatpush.msra.mxu0 %v804
    %1113 = vmatmul.f32.gmra.mxu0 %v1017
    %v1114 = vpop.f32.mrf.mxu0
    %v1115 = vadd.f32 %v1095, %v1114
    %1116 = vdwg.mxu0
    %1117 = vmatpush.msra.mxu0 %v866
    %1118 = vmatpush.msra.mxu0 %v864
    %1119 = vmatpush.msra.mxu0 %v862
    %1120 = vmatpush.msra.mxu0 %v860
    %1121 = vmatpush.msra.mxu0 %v858
    %1122 = vmatpush.msra.mxu0 %v856
    %1123 = vmatpush.msra.mxu0 %v854
    %1124 = vmatpush.msra.mxu0 %v852
    %1125 = vmatpush.msra.mxu0 %v850
    %1126 = vmatpush.msra.mxu0 %v848
    %1127 = vmatpush.msra.mxu0 %v846
    %1128 = vmatpush.msra.mxu0 %v844
    %1129 = vmatpush.msra.mxu0 %v842
    %1130 = vmatpush.msra.mxu0 %v840
    %1131 = vmatpush.msra.mxu0 %v838
    %1132 = vmatpush.msra.mxu0 %v836
    %1133 = vmatmul.f32.gmra.mxu0 %v1023
    %v1134 = vpop.f32.mrf.mxu0
    %v1135 = vadd.f32 %v1115, %v1134
    %1136 = vdwg.mxu0
    %1137 = vmatpush.msra.mxu0 %v898
    %1138 = vmatpush.msra.mxu0 %v896
    %1139 = vmatpush.msra.mxu0 %v894
    %1140 = vmatpush.msra.mxu0 %v892
    %1141 = vmatpush.msra.mxu0 %v890
    %1142 = vmatpush.msra.mxu0 %v888
    %1143 = vmatpush.msra.mxu0 %v886
    %1144 = vmatpush.msra.mxu0 %v884
    %1145 = vmatpush.msra.mxu0 %v882
    %1146 = vmatpush.msra.mxu0 %v880
    %1147 = vmatpush.msra.mxu0 %v878
    %1148 = vmatpush.msra.mxu0 %v876
    %1149 = vmatpush.msra.mxu0 %v874
    %1150 = vmatpush.msra.mxu0 %v872
    %1151 = vmatpush.msra.mxu0 %v870
    %1152 = vmatpush.msra.mxu0 %v868
    %1153 = vmatmul.f32.gmra.mxu0 %v1030
    %v1154 = vpop.f32.mrf.mxu0
    %v1155 = vadd.f32 %v1135, %v1154
    %1156 = vdwg.mxu0
    %1157 = vmatpush.msra.mxu0 %v930
    %1158 = vmatpush.msra.mxu0 %v928
    %1159 = vmatpush.msra.mxu0 %v926
    %1160 = vmatpush.msra.mxu0 %v924
    %1161 = vmatpush.msra.mxu0 %v922
    %1162 = vmatpush.msra.mxu0 %v920
    %1163 = vmatpush.msra.mxu0 %v918
    %1164 = vmatpush.msra.mxu0 %v916
    %1165 = vmatpush.msra.mxu0 %v914
    %1166 = vmatpush.msra.mxu0 %v912
    %1167 = vmatpush.msra.mxu0 %v910
    %1168 = vmatpush.msra.mxu0 %v908
    %1169 = vmatpush.msra.mxu0 %v906
    %1170 = vmatpush.msra.mxu0 %v904
    %1171 = vmatpush.msra.mxu0 %v902
    %1172 = vmatpush.msra.mxu0 %v900
    %1173 = vmatmul.f32.gmra.mxu0 %v1037
    %v1174 = vpop.f32.mrf.mxu0
    %v1175 = vadd.f32 %v1155, %v1174
    %1176 = vdwg.mxu0
    %1177 = vmatpush.msra.mxu0 %v962
    %1178 = vmatpush.msra.mxu0 %v960
    %1179 = vmatpush.msra.mxu0 %v958
    %1180 = vmatpush.msra.mxu0 %v956
    %1181 = vmatpush.msra.mxu0 %v954
    %1182 = vmatpush.msra.mxu0 %v952
    %1183 = vmatpush.msra.mxu0 %v950
    %1184 = vmatpush.msra.mxu0 %v948
    %1185 = vmatpush.msra.mxu0 %v946
    %1186 = vmatpush.msra.mxu0 %v944
    %1187 = vmatpush.msra.mxu0 %v942
    %1188 = vmatpush.msra.mxu0 %v940
    %1189 = vmatpush.msra.mxu0 %v938
    %1190 = vmatpush.msra.mxu0 %v936
    %1191 = vmatpush.msra.mxu0 %v934
    %1192 = vmatpush.msra.mxu0 %v932
    %1193 = vmatmul.f32.gmra.mxu0 %v1044
    %v1194 = vpop.f32.mrf.mxu0
    %v1195 = vadd.f32 %v1175, %v1194
    %1196 = vdwg.mxu0
    %1197 = vmatpush.msra.mxu0 %v994
    %1198 = vmatpush.msra.mxu0 %v992
    %1199 = vmatpush.msra.mxu0 %v990
    %1200 = vmatpush.msra.mxu0 %v988
    %1201 = vmatpush.msra.mxu0 %v986
    %1202 = vmatpush.msra.mxu0 %v984
    %1203 = vmatpush.msra.mxu0 %v982
    %1204 = vmatpush.msra.mxu0 %v980
    %1205 = vmatpush.msra.mxu0 %v978
    %1206 = vmatpush.msra.mxu0 %v976
    %1207 = vmatpush.msra.mxu0 %v974
    %1208 = vmatpush.msra.mxu0 %v972
    %1209 = vmatpush.msra.mxu0 %v970
    %1210 = vmatpush.msra.mxu0 %v968
    %1211 = vmatpush.msra.mxu0 %v966
    %1212 = vmatpush.msra.mxu0 %v964
    %1213 = vmatmul.f32.gmra.mxu0 %v1051
    %v1214 = vpop.f32.mrf.mxu0
    %v1215 = vadd.f32 %v1195, %v1214
    %1216 = vdwg.mxu0
    %1217 = vmatpush.msra.mxu0 %v771
    %1218 = vmatpush.msra.mxu0 %v769
    %1219 = vmatpush.msra.mxu0 %v767
    %1220 = vmatpush.msra.mxu0 %v765
    %1221 = vmatpush.msra.mxu0 %v763
    %1222 = vmatpush.msra.mxu0 %v761
    %1223 = vmatpush.msra.mxu0 %v759
    %1224 = vmatpush.msra.mxu0 %v757
    %1225 = vmatpush.msra.mxu0 %v755
    %1226 = vmatpush.msra.mxu0 %v753
    %1227 = vmatpush.msra.mxu0 %v751
    %1228 = vmatpush.msra.mxu0 %v749
    %1229 = vmatpush.msra.mxu0 %v747
    %1230 = vmatpush.msra.mxu0 %v745
    %1231 = vmatpush.msra.mxu0 %v743
    %1232 = vmatpush.msra.mxu0 %v741
    %1233 = vmatmul.f32.gmra.mxu0 %v1003
    %v1234 = vpop.f32.mrf.mxu0
    %v1235 = vadd.f32 %v1054, %v1234
    %1236 = vdwg.mxu0
    %1237 = vmatpush.msra.mxu0 %v803
    %1238 = vmatpush.msra.mxu0 %v801
    %1239 = vmatpush.msra.mxu0 %v799
    %1240 = vmatpush.msra.mxu0 %v797
    %1241 = vmatpush.msra.mxu0 %v795
    %1242 = vmatpush.msra.mxu0 %v793
    %1243 = vmatpush.msra.mxu0 %v791
    %1244 = vmatpush.msra.mxu0 %v789
    %1245 = vmatpush.msra.mxu0 %v787
    %1246 = vmatpush.msra.mxu0 %v785
    %1247 = vmatpush.msra.mxu0 %v783
    %1248 = vmatpush.msra.mxu0 %v781
    %1249 = vmatpush.msra.mxu0 %v779
    %1250 = vmatpush.msra.mxu0 %v777
    %1251 = vmatpush.msra.mxu0 %v775
    %1252 = vmatpush.msra.mxu0 %v773
    %1253 = vmatmul.f32.gmra.mxu0 %v1010
    %v1254 = vpop.f32.mrf.mxu0
    %v1255 = vadd.f32 %v1235, %v1254
    %1256 = vdwg.mxu0
    %1257 = vmatpush.msra.mxu0 %v835
    %1258 = vmatpush.msra.mxu0 %v833
    %1259 = vmatpush.msra.mxu0 %v831
    %1260 = vmatpush.msra.mxu0 %v829
    %1261 = vmatpush.msra.mxu0 %v827
    %1262 = vmatpush.msra.mxu0 %v825
    %1263 = vmatpush.msra.mxu0 %v823
    %1264 = vmatpush.msra.mxu0 %v821
    %1265 = vmatpush.msra.mxu0 %v819
    %1266 = vmatpush.msra.mxu0 %v817
    %1267 = vmatpush.msra.mxu0 %v815
    %1268 = vmatpush.msra.mxu0 %v813
    %1269 = vmatpush.msra.mxu0 %v811
    %1270 = vmatpush.msra.mxu0 %v809
    %1271 = vmatpush.msra.mxu0 %v807
    %1272 = vmatpush.msra.mxu0 %v805
    %1273 = vmatmul.f32.gmra.mxu0 %v1017
    %v1274 = vpop.f32.mrf.mxu0
    %v1275 = vadd.f32 %v1255, %v1274
    %1276 = vdwg.mxu0
    %1277 = vmatpush.msra.mxu0 %v867
    %1278 = vmatpush.msra.mxu0 %v865
    %1279 = vmatpush.msra.mxu0 %v863
    %1280 = vmatpush.msra.mxu0 %v861
    %1281 = vmatpush.msra.mxu0 %v859
    %1282 = vmatpush.msra.mxu0 %v857
    %1283 = vmatpush.msra.mxu0 %v855
    %1284 = vmatpush.msra.mxu0 %v853
    %1285 = vmatpush.msra.mxu0 %v851
    %1286 = vmatpush.msra.mxu0 %v849
    %1287 = vmatpush.msra.mxu0 %v847
    %1288 = vmatpush.msra.mxu0 %v845
    %1289 = vmatpush.msra.mxu0 %v843
    %1290 = vmatpush.msra.mxu0 %v841
    %1291 = vmatpush.msra.mxu0 %v839
    %1292 = vmatpush.msra.mxu0 %v837
    %1293 = vmatmul.f32.gmra.mxu0 %v1023
    %v1294 = vpop.f32.mrf.mxu0
    %v1295 = vadd.f32 %v1275, %v1294
    %1296 = vdwg.mxu0
    %1297 = vmatpush.msra.mxu0 %v899
    %1298 = vmatpush.msra.mxu0 %v897
    %1299 = vmatpush.msra.mxu0 %v895
    %1300 = vmatpush.msra.mxu0 %v893
    %1301 = vmatpush.msra.mxu0 %v891
    %1302 = vmatpush.msra.mxu0 %v889
    %1303 = vmatpush.msra.mxu0 %v887
    %1304 = vmatpush.msra.mxu0 %v885
    %1305 = vmatpush.msra.mxu0 %v883
    %1306 = vmatpush.msra.mxu0 %v881
    %1307 = vmatpush.msra.mxu0 %v879
    %1308 = vmatpush.msra.mxu0 %v877
    %1309 = vmatpush.msra.mxu0 %v875
    %1310 = vmatpush.msra.mxu0 %v873
    %1311 = vmatpush.msra.mxu0 %v871
    %1312 = vmatpush.msra.mxu0 %v869
    %1313 = vmatmul.f32.gmra.mxu0 %v1030
    %v1314 = vpop.f32.mrf.mxu0
    %v1315 = vadd.f32 %v1295, %v1314
    %1316 = vdwg.mxu0
    %1317 = vmatpush.msra.mxu0 %v931
    %1318 = vmatpush.msra.mxu0 %v929
    %1319 = vmatpush.msra.mxu0 %v927
    %1320 = vmatpush.msra.mxu0 %v925
    %1321 = vmatpush.msra.mxu0 %v923
    %1322 = vmatpush.msra.mxu0 %v921
    %1323 = vmatpush.msra.mxu0 %v919
    %1324 = vmatpush.msra.mxu0 %v917
    %1325 = vmatpush.msra.mxu0 %v915
    %1326 = vmatpush.msra.mxu0 %v913
    %1327 = vmatpush.msra.mxu0 %v911
    %1328 = vmatpush.msra.mxu0 %v909
    %1329 = vmatpush.msra.mxu0 %v907
    %1330 = vmatpush.msra.mxu0 %v905
    %1331 = vmatpush.msra.mxu0 %v903
    %1332 = vmatpush.msra.mxu0 %v901
    %1333 = vmatmul.f32.gmra.mxu0 %v1037
    %v1334 = vpop.f32.mrf.mxu0
    %v1335 = vadd.f32 %v1315, %v1334
    %1336 = vdwg.mxu0
    %1337 = vmatpush.msra.mxu0 %v963
    %1338 = vmatpush.msra.mxu0 %v961
    %1339 = vmatpush.msra.mxu0 %v959
    %1340 = vmatpush.msra.mxu0 %v957
    %1341 = vmatpush.msra.mxu0 %v955
    %1342 = vmatpush.msra.mxu0 %v953
    %1343 = vmatpush.msra.mxu0 %v951
    %1344 = vmatpush.msra.mxu0 %v949
    %1345 = vmatpush.msra.mxu0 %v947
    %1346 = vmatpush.msra.mxu0 %v945
    %1347 = vmatpush.msra.mxu0 %v943
    %1348 = vmatpush.msra.mxu0 %v941
    %1349 = vmatpush.msra.mxu0 %v939
    %1350 = vmatpush.msra.mxu0 %v937
    %1351 = vmatpush.msra.mxu0 %v935
    %1352 = vmatpush.msra.mxu0 %v933
    %1353 = vmatmul.f32.gmra.mxu0 %v1044
    %v1354 = vpop.f32.mrf.mxu0
    %v1355 = vadd.f32 %v1335, %v1354
    %1356 = vdwg.mxu0
    %1357 = vmatpush.msra.mxu0 %v995
    %1358 = vmatpush.msra.mxu0 %v993
    %1359 = vmatpush.msra.mxu0 %v991
    %1360 = vmatpush.msra.mxu0 %v989
    %1361 = vmatpush.msra.mxu0 %v987
    %1362 = vmatpush.msra.mxu0 %v985
    %1363 = vmatpush.msra.mxu0 %v983
    %1364 = vmatpush.msra.mxu0 %v981
    %1365 = vmatpush.msra.mxu0 %v979
    %1366 = vmatpush.msra.mxu0 %v977
    %1367 = vmatpush.msra.mxu0 %v975
    %1368 = vmatpush.msra.mxu0 %v973
    %1369 = vmatpush.msra.mxu0 %v971
    %1370 = vmatpush.msra.mxu0 %v969
    %1371 = vmatpush.msra.mxu0 %v967
    %1372 = vmatpush.msra.mxu0 %v965
    %1373 = vmatmul.f32.gmra.mxu0 %v1051
    %v1374 = vpop.f32.mrf.mxu0
    %v1375 = vadd.f32 %v1355, %v1374
    %1376 = vdwg.mxu0
    %v1377 = vadd.f32 %v739, %v1375
    %v1378 = vld [vmem:[#allocation10] sm:$0xff]
    %v1379 = vld [vmem:[#allocation10 + $0x8] sm:$0xff]
    %v1380 = vld [vmem:[#allocation10 + $0x10] sm:$0xff]
    %v1381 = vld [vmem:[#allocation10 + $0x18] sm:$0xff]
    %v1382 = vld [vmem:[#allocation10 + $0x20] sm:$0xff]
    %v1383 = vld [vmem:[#allocation10 + $0x28] sm:$0xff]
    %v1384 = vld [vmem:[#allocation10 + $0x30] sm:$0xff]
    %v1385 = vld [vmem:[#allocation10 + $0x38] sm:$0xff]
    %v1386 = vld [vmem:[#allocation10 + $0x40] sm:$0xff]
    %v1387 = vld [vmem:[#allocation10 + $0x48] sm:$0xff]
    %v1388 = vld [vmem:[#allocation10 + $0x50] sm:$0xff]
    %v1389 = vld [vmem:[#allocation10 + $0x58] sm:$0xff]
    %v1390 = vld [vmem:[#allocation10 + $0x60] sm:$0xff]
    %v1391 = vld [vmem:[#allocation10 + $0x68] sm:$0xff]
    %v1392 = vld [vmem:[#allocation10 + $0x70] sm:$0xff]
    %v1393 = vld [vmem:[#allocation10 + $0x78] sm:$0xff]
    %v1394 = vld [vmem:[#allocation10 + $0x80] sm:$0xff]
    %v1395 = vld [vmem:[#allocation10 + $0x88] sm:$0xff]
    %v1396 = vld [vmem:[#allocation10 + $0x90] sm:$0xff]
    %v1397 = vld [vmem:[#allocation10 + $0x98] sm:$0xff]
    %v1398 = vld [vmem:[#allocation10 + $0xa0] sm:$0xff]
    %v1399 = vld [vmem:[#allocation10 + $0xa8] sm:$0xff]
    %v1400 = vld [vmem:[#allocation10 + $0xb0] sm:$0xff]
    %v1401 = vld [vmem:[#allocation10 + $0xb8] sm:$0xff]
    %v1402 = vld [vmem:[#allocation10 + $0xc0] sm:$0xff]
    %v1403 = vld [vmem:[#allocation10 + $0xc8] sm:$0xff]
    %v1404 = vld [vmem:[#allocation10 + $0xd0] sm:$0xff]
    %v1405 = vld [vmem:[#allocation10 + $0xd8] sm:$0xff]
    %v1406 = vld [vmem:[#allocation10 + $0xe0] sm:$0xff]
    %v1407 = vld [vmem:[#allocation10 + $0xe8] sm:$0xff]
    %v1408 = vld [vmem:[#allocation10 + $0xf0] sm:$0xff]
    %v1409 = vld [vmem:[#allocation10 + $0xf8] sm:$0xff]
    %v1410 = vld [vmem:[#allocation10 + $0x100] sm:$0xff]
    %v1411 = vld [vmem:[#allocation10 + $0x108] sm:$0xff]
    %v1412 = vld [vmem:[#allocation10 + $0x110] sm:$0xff]
    %v1413 = vld [vmem:[#allocation10 + $0x118] sm:$0xff]
    %v1414 = vld [vmem:[#allocation10 + $0x120] sm:$0xff]
    %v1415 = vld [vmem:[#allocation10 + $0x128] sm:$0xff]
    %v1416 = vld [vmem:[#allocation10 + $0x130] sm:$0xff]
    %v1417 = vld [vmem:[#allocation10 + $0x138] sm:$0xff]
    %v1418 = vld [vmem:[#allocation10 + $0x140] sm:$0xff]
    %v1419 = vld [vmem:[#allocation10 + $0x148] sm:$0xff]
    %v1420 = vld [vmem:[#allocation10 + $0x150] sm:$0xff]
    %v1421 = vld [vmem:[#allocation10 + $0x158] sm:$0xff]
    %v1422 = vld [vmem:[#allocation10 + $0x160] sm:$0xff]
    %v1423 = vld [vmem:[#allocation10 + $0x168] sm:$0xff]
    %v1424 = vld [vmem:[#allocation10 + $0x170] sm:$0xff]
    %v1425 = vld [vmem:[#allocation10 + $0x178] sm:$0xff]
    %v1426 = vld [vmem:[#allocation10 + $0x180] sm:$0xff]
    %v1427 = vld [vmem:[#allocation10 + $0x188] sm:$0xff]
    %v1428 = vld [vmem:[#allocation10 + $0x190] sm:$0xff]
    %v1429 = vld [vmem:[#allocation10 + $0x198] sm:$0xff]
    %v1430 = vld [vmem:[#allocation10 + $0x1a0] sm:$0xff]
    %v1431 = vld [vmem:[#allocation10 + $0x1a8] sm:$0xff]
    %v1432 = vld [vmem:[#allocation10 + $0x1b0] sm:$0xff]
    %v1433 = vld [vmem:[#allocation10 + $0x1b8] sm:$0xff]
    %v1434 = vld [vmem:[#allocation10 + $0x1c0] sm:$0xff]
    %v1435 = vld [vmem:[#allocation10 + $0x1c8] sm:$0xff]
    %v1436 = vld [vmem:[#allocation10 + $0x1d0] sm:$0xff]
    %v1437 = vld [vmem:[#allocation10 + $0x1d8] sm:$0xff]
    %v1438 = vld [vmem:[#allocation10 + $0x1e0] sm:$0xff]
    %v1439 = vld [vmem:[#allocation10 + $0x1e8] sm:$0xff]
    %v1440 = vld [vmem:[#allocation10 + $0x1f0] sm:$0xff]
    %v1441 = vld [vmem:[#allocation10 + $0x1f8] sm:$0xff]
    %v1442 = vld [vmem:[#allocation10 + $0x200] sm:$0xff]
    %v1443 = vld [vmem:[#allocation10 + $0x208] sm:$0xff]
    %v1444 = vld [vmem:[#allocation10 + $0x210] sm:$0xff]
    %v1445 = vld [vmem:[#allocation10 + $0x218] sm:$0xff]
    %v1446 = vld [vmem:[#allocation10 + $0x220] sm:$0xff]
    %v1447 = vld [vmem:[#allocation10 + $0x228] sm:$0xff]
    %v1448 = vld [vmem:[#allocation10 + $0x230] sm:$0xff]
    %v1449 = vld [vmem:[#allocation10 + $0x238] sm:$0xff]
    %v1450 = vld [vmem:[#allocation10 + $0x240] sm:$0xff]
    %v1451 = vld [vmem:[#allocation10 + $0x248] sm:$0xff]
    %v1452 = vld [vmem:[#allocation10 + $0x250] sm:$0xff]
    %v1453 = vld [vmem:[#allocation10 + $0x258] sm:$0xff]
    %v1454 = vld [vmem:[#allocation10 + $0x260] sm:$0xff]
    %v1455 = vld [vmem:[#allocation10 + $0x268] sm:$0xff]
    %v1456 = vld [vmem:[#allocation10 + $0x270] sm:$0xff]
    %v1457 = vld [vmem:[#allocation10 + $0x278] sm:$0xff]
    %v1458 = vld [vmem:[#allocation10 + $0x280] sm:$0xff]
    %v1459 = vld [vmem:[#allocation10 + $0x288] sm:$0xff]
    %v1460 = vld [vmem:[#allocation10 + $0x290] sm:$0xff]
    %v1461 = vld [vmem:[#allocation10 + $0x298] sm:$0xff]
    %v1462 = vld [vmem:[#allocation10 + $0x2a0] sm:$0xff]
    %v1463 = vld [vmem:[#allocation10 + $0x2a8] sm:$0xff]
    %v1464 = vld [vmem:[#allocation10 + $0x2b0] sm:$0xff]
    %v1465 = vld [vmem:[#allocation10 + $0x2b8] sm:$0xff]
    %v1466 = vld [vmem:[#allocation10 + $0x2c0] sm:$0xff]
    %v1467 = vld [vmem:[#allocation10 + $0x2c8] sm:$0xff]
    %v1468 = vld [vmem:[#allocation10 + $0x2d0] sm:$0xff]
    %v1469 = vld [vmem:[#allocation10 + $0x2d8] sm:$0xff]
    %v1470 = vld [vmem:[#allocation10 + $0x2e0] sm:$0xff]
    %v1471 = vld [vmem:[#allocation10 + $0x2e8] sm:$0xff]
    %v1472 = vld [vmem:[#allocation10 + $0x2f0] sm:$0xff]
    %v1473 = vld [vmem:[#allocation10 + $0x2f8] sm:$0xff]
    %v1474 = vld [vmem:[#allocation10 + $0x300] sm:$0xff]
    %v1475 = vld [vmem:[#allocation10 + $0x308] sm:$0xff]
    %v1476 = vld [vmem:[#allocation10 + $0x310] sm:$0xff]
    %v1477 = vld [vmem:[#allocation10 + $0x318] sm:$0xff]
    %v1478 = vld [vmem:[#allocation10 + $0x320] sm:$0xff]
    %v1479 = vld [vmem:[#allocation10 + $0x328] sm:$0xff]
    %v1480 = vld [vmem:[#allocation10 + $0x330] sm:$0xff]
    %v1481 = vld [vmem:[#allocation10 + $0x338] sm:$0xff]
    %v1482 = vld [vmem:[#allocation10 + $0x340] sm:$0xff]
    %v1483 = vld [vmem:[#allocation10 + $0x348] sm:$0xff]
    %v1484 = vld [vmem:[#allocation10 + $0x350] sm:$0xff]
    %v1485 = vld [vmem:[#allocation10 + $0x358] sm:$0xff]
    %v1486 = vld [vmem:[#allocation10 + $0x360] sm:$0xff]
    %v1487 = vld [vmem:[#allocation10 + $0x368] sm:$0xff]
    %v1488 = vld [vmem:[#allocation10 + $0x370] sm:$0xff]
    %v1489 = vld [vmem:[#allocation10 + $0x378] sm:$0xff]
    %v1490 = vld [vmem:[#allocation10 + $0x380] sm:$0xff]
    %v1491 = vld [vmem:[#allocation10 + $0x388] sm:$0xff]
    %v1492 = vld [vmem:[#allocation10 + $0x390] sm:$0xff]
    %v1493 = vld [vmem:[#allocation10 + $0x398] sm:$0xff]
    %v1494 = vld [vmem:[#allocation10 + $0x3a0] sm:$0xff]
    %v1495 = vld [vmem:[#allocation10 + $0x3a8] sm:$0xff]
    %v1496 = vld [vmem:[#allocation10 + $0x3b0] sm:$0xff]
    %v1497 = vld [vmem:[#allocation10 + $0x3b8] sm:$0xff]
    %v1498 = vld [vmem:[#allocation10 + $0x3c0] sm:$0xff]
    %v1499 = vld [vmem:[#allocation10 + $0x3c8] sm:$0xff]
    %v1500 = vld [vmem:[#allocation10 + $0x3d0] sm:$0xff]
    %v1501 = vld [vmem:[#allocation10 + $0x3d8] sm:$0xff]
    %v1502 = vld [vmem:[#allocation10 + $0x3e0] sm:$0xff]
    %v1503 = vld [vmem:[#allocation10 + $0x3e8] sm:$0xff]
    %v1504 = vld [vmem:[#allocation10 + $0x3f0] sm:$0xff]
    %v1505 = vld [vmem:[#allocation10 + $0x3f8] sm:$0xff]
    %v1506 = vld [vmem:[%s6] sm:$0x1]
    %v1507 = vsub.f32 %v1215, -0.6
    %v1508 = vmax.f32 %v1507, 0.0
    %v1509 = vsub.f32 0.2, %v1215
    %v1510 = vmax.f32 %v1509, 0.0
    %v1511 = vmul.f32 %v1508, %v1510
    %v1512 = vmul.f32 %v1511, %v1511
    %v1513 = vmul.f32 %v1512, 39.0625
    %v1514 = vsub.f32 %v1215, -0.4
    %v1515 = vmax.f32 %v1514, 0.0
    %v1516 = vsub.f32 0.4, %v1215
    %v1517 = vmax.f32 %v1516, 0.0
    %v1518 = vmul.f32 %v1515, %v1517
    %v1519 = vmul.f32 %v1518, %v1518
    %v1520 = vmul.f32 %v1519, 39.0625
    %v1521 = vsub.f32 %v1215, -0.2
    %v1522 = vmax.f32 %v1521, 0.0
    %v1523 = vsub.f32 0.6, %v1215
    %v1524 = vmax.f32 %v1523, 0.0
    %v1525 = vmul.f32 %v1522, %v1524
    %v1526 = vmul.f32 %v1525, %v1525
    %v1527 = vmul.f32 %v1526, 39.0625
    %v1528 = vmax.f32 %v1215, 0.0
    %v1529 = vsub.f32 0.8, %v1215
    %v1530 = vmax.f32 %v1529, 0.0
    %v1531 = vmul.f32 %v1528, %v1530
    %v1532 = vmul.f32 %v1531, %v1531
    %v1533 = vmul.f32 %v1532, 39.0625
    %v1534 = vsub.f32 %v1215, 0.2
    %v1535 = vmax.f32 %v1534, 0.0
    %v1536 = vsub.f32 1.0, %v1215
    %v1537 = vmax.f32 %v1536, 0.0
    %v1538 = vmul.f32 %v1535, %v1537
    %v1539 = vmul.f32 %v1538, %v1538
    %v1540 = vmul.f32 %v1539, 39.0625
    %v1541 = vsub.f32 %v1215, 0.4
    %v1542 = vmax.f32 %v1541, 0.0
    %v1543 = vsub.f32 1.2, %v1215
    %v1544 = vmax.f32 %v1543, 0.0
    %v1545 = vmul.f32 %v1542, %v1544
    %v1546 = vmul.f32 %v1545, %v1545
    %v1547 = vmul.f32 %v1546, 39.0625
    %v1548 = vsub.f32 %v1215, 0.6
    %v1549 = vmax.f32 %v1548, 0.0
    %v1550 = vsub.f32 1.4, %v1215
    %v1551 = vmax.f32 %v1550, 0.0
    %v1552 = vmul.f32 %v1549, %v1551
    %v1553 = vmul.f32 %v1552, %v1552
    %v1554 = vmul.f32 %v1553, 39.0625
    %v1555 = vsub.f32 %v1215, 0.8
    %v1556 = vmax.f32 %v1555, 0.0
    %v1557 = vsub.f32 1.6, %v1215
    %v1558 = vmax.f32 %v1557, 0.0
    %v1559 = vmul.f32 %v1556, %v1558
    %v1560 = vmul.f32 %v1559, %v1559
    %v1561 = vmul.f32 %v1560, 39.0625
    %1562 = vmatpush.msra.mxu0 %v1393
    %1563 = vmatpush.msra.mxu0 %v1392
    %1564 = vmatpush.msra.mxu0 %v1391
    %1565 = vmatpush.msra.mxu0 %v1390
    %1566 = vmatpush.msra.mxu0 %v1389
    %1567 = vmatpush.msra.mxu0 %v1388
    %1568 = vmatpush.msra.mxu0 %v1387
    %1569 = vmatpush.msra.mxu0 %v1386
    %1570 = vmatpush.msra.mxu0 %v1385
    %1571 = vmatpush.msra.mxu0 %v1384
    %1572 = vmatpush.msra.mxu0 %v1383
    %1573 = vmatpush.msra.mxu0 %v1382
    %1574 = vmatpush.msra.mxu0 %v1381
    %1575 = vmatpush.msra.mxu0 %v1380
    %1576 = vmatpush.msra.mxu0 %v1379
    %1577 = vmatpush.msra.mxu0 %v1378
    %1578 = vmatmul.f32.gmra.mxu0 %v1513
    %v1579 = vpop.f32.mrf.mxu0
    %v1580 = vadd.f32 0.0, %v1579
    %1581 = vdwg.mxu0
    %1582 = vmatpush.msra.mxu0 %v1409
    %1583 = vmatpush.msra.mxu0 %v1408
    %1584 = vmatpush.msra.mxu0 %v1407
    %1585 = vmatpush.msra.mxu0 %v1406
    %1586 = vmatpush.msra.mxu0 %v1405
    %1587 = vmatpush.msra.mxu0 %v1404
    %1588 = vmatpush.msra.mxu0 %v1403
    %1589 = vmatpush.msra.mxu0 %v1402
    %1590 = vmatpush.msra.mxu0 %v1401
    %1591 = vmatpush.msra.mxu0 %v1400
    %1592 = vmatpush.msra.mxu0 %v1399
    %1593 = vmatpush.msra.mxu0 %v1398
    %1594 = vmatpush.msra.mxu0 %v1397
    %1595 = vmatpush.msra.mxu0 %v1396
    %1596 = vmatpush.msra.mxu0 %v1395
    %1597 = vmatpush.msra.mxu0 %v1394
    %1598 = vmatmul.f32.gmra.mxu0 %v1520
    %v1599 = vpop.f32.mrf.mxu0
    %v1600 = vadd.f32 %v1580, %v1599
    %1601 = vdwg.mxu0
    %1602 = vmatpush.msra.mxu0 %v1425
    %1603 = vmatpush.msra.mxu0 %v1424
    %1604 = vmatpush.msra.mxu0 %v1423
    %1605 = vmatpush.msra.mxu0 %v1422
    %1606 = vmatpush.msra.mxu0 %v1421
    %1607 = vmatpush.msra.mxu0 %v1420
    %1608 = vmatpush.msra.mxu0 %v1419
    %1609 = vmatpush.msra.mxu0 %v1418
    %1610 = vmatpush.msra.mxu0 %v1417
    %1611 = vmatpush.msra.mxu0 %v1416
    %1612 = vmatpush.msra.mxu0 %v1415
    %1613 = vmatpush.msra.mxu0 %v1414
    %1614 = vmatpush.msra.mxu0 %v1413
    %1615 = vmatpush.msra.mxu0 %v1412
    %1616 = vmatpush.msra.mxu0 %v1411
    %1617 = vmatpush.msra.mxu0 %v1410
    %1618 = vmatmul.f32.gmra.mxu0 %v1527
    %v1619 = vpop.f32.mrf.mxu0
    %v1620 = vadd.f32 %v1600, %v1619
    %1621 = vdwg.mxu0
    %1622 = vmatpush.msra.mxu0 %v1441
    %1623 = vmatpush.msra.mxu0 %v1440
    %1624 = vmatpush.msra.mxu0 %v1439
    %1625 = vmatpush.msra.mxu0 %v1438
    %1626 = vmatpush.msra.mxu0 %v1437
    %1627 = vmatpush.msra.mxu0 %v1436
    %1628 = vmatpush.msra.mxu0 %v1435
    %1629 = vmatpush.msra.mxu0 %v1434
    %1630 = vmatpush.msra.mxu0 %v1433
    %1631 = vmatpush.msra.mxu0 %v1432
    %1632 = vmatpush.msra.mxu0 %v1431
    %1633 = vmatpush.msra.mxu0 %v1430
    %1634 = vmatpush.msra.mxu0 %v1429
    %1635 = vmatpush.msra.mxu0 %v1428
    %1636 = vmatpush.msra.mxu0 %v1427
    %1637 = vmatpush.msra.mxu0 %v1426
    %1638 = vmatmul.f32.gmra.mxu0 %v1533
    %v1639 = vpop.f32.mrf.mxu0
    %v1640 = vadd.f32 %v1620, %v1639
    %1641 = vdwg.mxu0
    %1642 = vmatpush.msra.mxu0 %v1457
    %1643 = vmatpush.msra.mxu0 %v1456
    %1644 = vmatpush.msra.mxu0 %v1455
    %1645 = vmatpush.msra.mxu0 %v1454
    %1646 = vmatpush.msra.mxu0 %v1453
    %1647 = vmatpush.msra.mxu0 %v1452
    %1648 = vmatpush.msra.mxu0 %v1451
    %1649 = vmatpush.msra.mxu0 %v1450
    %1650 = vmatpush.msra.mxu0 %v1449
    %1651 = vmatpush.msra.mxu0 %v1448
    %1652 = vmatpush.msra.mxu0 %v1447
    %1653 = vmatpush.msra.mxu0 %v1446
    %1654 = vmatpush.msra.mxu0 %v1445
    %1655 = vmatpush.msra.mxu0 %v1444
    %1656 = vmatpush.msra.mxu0 %v1443
    %1657 = vmatpush.msra.mxu0 %v1442
    %1658 = vmatmul.f32.gmra.mxu0 %v1540
    %v1659 = vpop.f32.mrf.mxu0
    %v1660 = vadd.f32 %v1640, %v1659
    %1661 = vdwg.mxu0
    %1662 = vmatpush.msra.mxu0 %v1473
    %1663 = vmatpush.msra.mxu0 %v1472
    %1664 = vmatpush.msra.mxu0 %v1471
    %1665 = vmatpush.msra.mxu0 %v1470
    %1666 = vmatpush.msra.mxu0 %v1469
    %1667 = vmatpush.msra.mxu0 %v1468
    %1668 = vmatpush.msra.mxu0 %v1467
    %1669 = vmatpush.msra.mxu0 %v1466
    %1670 = vmatpush.msra.mxu0 %v1465
    %1671 = vmatpush.msra.mxu0 %v1464
    %1672 = vmatpush.msra.mxu0 %v1463
    %1673 = vmatpush.msra.mxu0 %v1462
    %1674 = vmatpush.msra.mxu0 %v1461
    %1675 = vmatpush.msra.mxu0 %v1460
    %1676 = vmatpush.msra.mxu0 %v1459
    %1677 = vmatpush.msra.mxu0 %v1458
    %1678 = vmatmul.f32.gmra.mxu0 %v1547
    %v1679 = vpop.f32.mrf.mxu0
    %v1680 = vadd.f32 %v1660, %v1679
    %1681 = vdwg.mxu0
    %1682 = vmatpush.msra.mxu0 %v1489
    %1683 = vmatpush.msra.mxu0 %v1488
    %1684 = vmatpush.msra.mxu0 %v1487
    %1685 = vmatpush.msra.mxu0 %v1486
    %1686 = vmatpush.msra.mxu0 %v1485
    %1687 = vmatpush.msra.mxu0 %v1484
    %1688 = vmatpush.msra.mxu0 %v1483
    %1689 = vmatpush.msra.mxu0 %v1482
    %1690 = vmatpush.msra.mxu0 %v1481
    %1691 = vmatpush.msra.mxu0 %v1480
    %1692 = vmatpush.msra.mxu0 %v1479
    %1693 = vmatpush.msra.mxu0 %v1478
    %1694 = vmatpush.msra.mxu0 %v1477
    %1695 = vmatpush.msra.mxu0 %v1476
    %1696 = vmatpush.msra.mxu0 %v1475
    %1697 = vmatpush.msra.mxu0 %v1474
    %1698 = vmatmul.f32.gmra.mxu0 %v1554
    %v1699 = vpop.f32.mrf.mxu0
    %v1700 = vadd.f32 %v1680, %v1699
    %1701 = vdwg.mxu0
    %1702 = vmatpush.msra.mxu0 %v1505
    %1703 = vmatpush.msra.mxu0 %v1504
    %1704 = vmatpush.msra.mxu0 %v1503
    %1705 = vmatpush.msra.mxu0 %v1502
    %1706 = vmatpush.msra.mxu0 %v1501
    %1707 = vmatpush.msra.mxu0 %v1500
    %1708 = vmatpush.msra.mxu0 %v1499
    %1709 = vmatpush.msra.mxu0 %v1498
    %1710 = vmatpush.msra.mxu0 %v1497
    %1711 = vmatpush.msra.mxu0 %v1496
    %1712 = vmatpush.msra.mxu0 %v1495
    %1713 = vmatpush.msra.mxu0 %v1494
    %1714 = vmatpush.msra.mxu0 %v1493
    %1715 = vmatpush.msra.mxu0 %v1492
    %1716 = vmatpush.msra.mxu0 %v1491
    %1717 = vmatpush.msra.mxu0 %v1490
    %1718 = vmatmul.f32.gmra.mxu0 %v1561
    %v1719 = vpop.f32.mrf.mxu0
    %v1720 = vadd.f32 %v1700, %v1719
    %1721 = vdwg.mxu0
    %v1722 = vadd.f32 %v1377, %v1720
    %v1724 = vperm.slane %v1506, 0
    %v1726 = vadd.f32 %v1722, %v1724
    %1727 = vst [vmem:[#allocation11] sm:$0xff] %v1726
    // Predicated region
    $region50: #{tpu_custom_call.1} parent=1 // pred_check
      _
    $region51: #{tpu_custom_call.1} parent=1 // pred_check_branch
      %1729 = sbr.rel (0) target = $region53
    $region52: #{tpu_custom_call.1} parent=1 // pred_region
      %1731 = vsyncadd [#allocation4], 0
      %s1733 = sshll.u32 [#allocation11], 4
      %s1734 = int_to_ptr.vmem [resolvable:$true] %s1733
      %s1735 = sshll.u32 %s7, 4
      %s1736 = int_to_ptr.hbm [resolvable:$true] %s1735
      %1738 = dma.vmem_to_hbm [thread:$0]  %s1734, 128, %s1736, [#allocation4]
    $region53: #{tpu_custom_call.1} parent=1 // pred_fallthru
      _
    // Predicated region
    $region54: #{tpu_custom_call.1} parent=1 // pred_check
      _
    $region55: #{tpu_custom_call.1} parent=1 // pred_check_branch
      %1740 = sbr.rel (0) target = $region57
    $region56: #{tpu_custom_call.1} parent=1 // pred_region
      %1742 = dma.done [#allocation4], 128
    $region57: #{tpu_custom_call.1} parent=1 // pred_fallthru
      _
    %1743 = vsyncpa [#allocation3], 1
    %1744 = vsyncpa [#allocation6], 1
    %1745 = vsyncpa [#allocation9], 1
    %1746 = vsyncpa [#allocation4], 1

</llo_original>
